<compile_context>
chip_gen: v6e
topology: v6e:2x2x1
jax: 0.10.0
libtpu: 0.0.40
codegen_flags: <defaults>
</compile_context>

<pallas_src>
import math

import jax
import jax.numpy as jnp
from jax import lax
from jax.experimental import pallas as pl
from jax.experimental.pallas import tpu as pltpu


def _sigmoid(z):
    # tanh-based sigmoid (EUP path); used by the pure-JAX reference.
    return 0.5 * (jnp.tanh(0.5 * z) + 1.0)


# ----------------------------- Pallas kernel --------------------------------

def lstm_stack_kernel(x_ref, wih_ref, whh_ref, b_ref, out_ref,
                      y_scr, pre_scr, gate_scr):
    """One grid step == one LSTM layer.  grid = (num_layers,), "arbitrary".

    x_ref   : (B, S, H)   input sequence (block resident across all layers)
    wih_ref : (H, 4H)     bf16 layer-l input weights   (streamed per layer)
    whh_ref : (H, 4H)     bf16 layer-l recurrent weights
    b_ref   : (1, 4H)     f32  b_ih + b_hh, gate order [i, f, g, o]
    out_ref : (B, S, H)   output block (VMEM resident; one HBM writeback)
    y_scr   : (B, S, H)   f32 inter-layer activations (persists across layers)
    pre_scr : (S, 4B, H)  f32 gate-packed input projection, time-major
    gate_scr: (4B, H)     f32 per-step packed recurrent contribution
    """
    B, S, H = x_ref.shape
    layer = pl.program_id(0)

    @pl.when(layer == 0)
    def _():
        y_scr[...] = x_ref[...].astype(jnp.float32)

    inp = y_scr[...]                                  # (B,S,H) f32 (read before any store)
    wih = wih_ref[...]                                # (H,4H) bf16
    whh = whh_ref[...]                                # (H,4H) bf16
    b = b_ref[...]                                    # (1,4H) f32

    # Hoisted input projection for the whole sequence (no sequential dep):
    # one (B*S, H) x (H, 4H) bf16 MXU matmul, f32 accumulation.
    pre = jnp.dot(inp.reshape(B * S, H).astype(jnp.bfloat16), wih,
                  preferred_element_type=jnp.float32) + b          # (B*S, 4H)

    # Scatter into the time-major, gate-packed scratch:
    #   pre_scr[t, k*B + b, :] = gate k of batch b at time t
    # (RHS slices are vreg-aligned (8,128) extracts; LHS are strided sublane
    #  stores, done once per layer.)
    for k in range(4):
        for bb in range(B):
            pre_scr[:, k * B + bb, :] = pre[bb * S:(bb + 1) * S,
                                            k * H:(k + 1) * H]

    # Per-sublane fused nonlinearity constants:
    #   rows [0,2B) = i, [B..) ... order is i,f,g,o blocks of B rows each.
    #   sigmoid(z) = 0.5*tanh(0.5*z) + 0.5  for i/f/o rows;  tanh(z) for g rows.
    row = lax.broadcasted_iota(jnp.int32, (4 * B, 1), 0)
    is_g = jnp.logical_and(row >= 2 * B, row < 3 * B)
    scale = jnp.where(is_g, 1.0, 0.5)                 # (4B,1) f32
    alpha = scale
    shift = jnp.where(is_g, 0.0, 0.5)

    h = jnp.zeros((B, H), jnp.float32)
    c = jnp.zeros((B, H), jnp.float32)
    for t in range(S):                                # fully unrolled (S static)
        if t == 0:
            gates = pre_scr[0]                        # h == 0: skip h @ W_hh
        else:
            rec = jnp.dot(h.astype(jnp.bfloat16), whh,
                          preferred_element_type=jnp.float32)      # (B, 4H)
            # pack (B,4H) -> (4B,H) via 4 lane-aligned sub-stores (gate-major)
            for k in range(4):
                gate_scr[k * B:(k + 1) * B, :] = rec[:, k * H:(k + 1) * H]
            gates = pre_scr[t] + gate_scr[...]        # full (8,128) vreg add
        # ONE EUP tanh over the packed tile, then per-sublane affine.
        act = alpha * jnp.tanh(scale * gates) + shift  # (4B, H)
        i_g = act[0 * B:1 * B]
        f_g = act[1 * B:2 * B]
        g_g = act[2 * B:3 * B]
        o_g = act[3 * B:4 * B]
        c = (i_g * g_g) if t == 0 else (f_g * c + i_g * g_g)
        h = o_g * jnp.tanh(c)
        y_scr[:, t, :] = h                            # next layer's input (f32)
        out_ref[:, t, :] = h.astype(out_ref.dtype)    # direct per-step store


# ----------------------------- wrapper ---------------------------------------

def textrnn_forward(x, params):
    """TextRNN.forward: x -> LSTM(x)[0] -> Dropout (identity at inference)."""
    B, S, H = x.shape
    wih = params["wih"]                               # (L, H, 4H) f32
    whh = params["whh"]                               # (L, H, 4H) f32
    b = params["b"]                                   # (L, 1, 4H) f32
    num_layers = wih.shape[0]

    # bf16 matmul operands (f32 accumulation inside the kernel): halves weight
    # HBM traffic and uses the native bf16 MXU path on v6e/v7x.
    wih_bf = wih.astype(jnp.bfloat16)
    whh_bf = whh.astype(jnp.bfloat16)

    full_spec = pl.BlockSpec((B, S, H), lambda l: (0, 0, 0))
    w_spec = pl.BlockSpec((None, H, 4 * H), lambda l: (l, 0, 0))
    b_spec = pl.BlockSpec((None, 1, 4 * H), lambda l: (l, 0, 0))

    out = pl.pallas_call(
        lstm_stack_kernel,
        out_shape=jax.ShapeDtypeStruct((B, S, H), x.dtype),
        grid=(num_layers,),
        in_specs=[full_spec, w_spec, w_spec, b_spec],
        out_specs=full_spec,
        scratch_shapes=[
            pltpu.VMEM((B, S, H), jnp.float32),       # y_scr  (inter-layer)
            pltpu.VMEM((S, 4 * B, H), jnp.float32),   # pre_scr (packed proj.)
            pltpu.VMEM((4 * B, H), jnp.float32),      # gate_scr (packed rec.)
        ],
        compiler_params=pltpu.CompilerParams(
            # Layers are strictly sequential; the recurrence itself is serial,
            # so no "parallel" axis exists at B=2 (no batch grid axis on v7x).
            dimension_semantics=("arbitrary",)),
    )(x, wih_bf, whh_bf, b)

    # TODO(synk): nn.Dropout is identity in eval/inference mode; training-mode
    # dropout (pltpu.prng_* masking) is intentionally not applied here.
    return out


# ----------------------------- params / reference ----------------------------

def init_params(key, hidden, num_layers):
    """torch.nn.LSTM default init: U(-1/sqrt(H), 1/sqrt(H)) for all params."""
    k = 1.0 / math.sqrt(hidden)
    keys = jax.random.split(key, 4 * num_layers)
    wih, whh, b = [], [], []
    for l in range(num_layers):
        k0, k1, k2, k3 = keys[4 * l:4 * l + 4]
        # stored pre-transposed (H, 4H) so the kernel does x @ W;
        # gate order [i, f, g, o] along the 4H axis (PyTorch order);
        # bias is b_ih + b_hh combined.
        wih.append(jax.random.uniform(k0, (hidden, 4 * hidden), jnp.float32, -k, k))
        whh.append(jax.random.uniform(k1, (hidden, 4 * hidden), jnp.float32, -k, k))
        b.append(jax.random.uniform(k2, (4 * hidden,), jnp.float32, -k, k)
                 + jax.random.uniform(k3, (4 * hidden,), jnp.float32, -k, k))
    return {"wih": jnp.stack(wih),
            "whh": jnp.stack(whh),
            "b": jnp.stack(b).reshape(num_layers, 1, 4 * hidden)}


def lstm_reference(x, params):
    """Pure-JAX f32 reference mirroring torch.nn.LSTM(batch_first=True)."""
    B, S, H = x.shape
    num_layers = params["wih"].shape[0]
    inp = x
    for l in range(num_layers):
        wih = params["wih"][l]
        whh = params["whh"][l]
        b = params["b"][l]
        h = jnp.zeros((B, H), jnp.float32)
        c = jnp.zeros((B, H), jnp.float32)
        outs = []
        for t in range(S):
            gates = (jnp.dot(inp[:, t, :], wih, precision=lax.Precision.HIGHEST)
                     + jnp.dot(h, whh, precision=lax.Precision.HIGHEST) + b)
            i_g = _sigmoid(gates[:, :H])
            f_g = _sigmoid(gates[:, H:2 * H])
            g_g = jnp.tanh(gates[:, 2 * H:3 * H])
            o_g = _sigmoid(gates[:, 3 * H:])
            c = f_g * c + i_g * g_g
            h = o_g * jnp.tanh(c)
            outs.append(h)
        inp = jnp.stack(outs, axis=1)
    return inp


# ------------------------------------ main -----------------------------------

if __name__ == "__main__":
    key = jax.random.PRNGKey(0)
    pkey, xkey = jax.random.split(key)

    batch, seq, hidden, num_layers = 2, 8, 128, 2
    params = init_params(pkey, hidden, num_layers)
    x = jax.random.normal(xkey, (batch, seq, hidden), jnp.float32)

    out = jax.jit(textrnn_forward)(x, params)
    jax.block_until_ready(out)

    assert out.shape == (batch, seq, hidden)
    assert bool(jnp.isfinite(out).all())

    ref = lstm_reference(x, params)
    max_err = float(jnp.max(jnp.abs(out - ref)))
    # bf16 matmul operands (f32 accumulation) vs. the f32 reference:
    # ~1e-2 expected, so the tolerance is loosened per the review.
    assert max_err < 5e-2, f"mismatch vs reference: {max_err}"

    print("KERNEL_OK")
</pallas_src>

<mosaic_0001>
module attributes {stable_mosaic.version = 11 : i64} {
  func.func @lstm_stack_kernel(%arg0: i32, %arg1: memref<2x8x128xf32, #tpu.memory_space<vmem>>, %arg2: memref<1x128x512xbf16, #tpu.memory_space<vmem>>, %arg3: memref<1x128x512xbf16, #tpu.memory_space<vmem>>, %arg4: memref<1x1x512xf32, #tpu.memory_space<vmem>>, %arg5: memref<2x8x128xf32, #tpu.memory_space<vmem>>, %arg6: memref<2x8x128xf32, #tpu.memory_space<vmem>>, %arg7: memref<8x8x128xf32, #tpu.memory_space<vmem>>, %arg8: memref<8x128xf32, #tpu.memory_space<vmem>>) attributes {dimension_semantics = [#tpu.dimension_semantics<arbitrary>], iteration_bounds = array<i64: 2>, scalar_prefetch = 0 : i64, scratch_operands = 3 : i64, tpu.core_type = #tpu.core_type<tc>, window_params = [{pipeline_mode = #tpu.pipeline_mode<synchronous>, transform_indices = @transform_0, window_bounds = array<i64: 2, 8, 128>}, {transform_indices = @transform_1, window_bounds = array<i64: 1, 128, 512>}, {transform_indices = @transform_2, window_bounds = array<i64: 1, 128, 512>}, {transform_indices = @transform_3, window_bounds = array<i64: 1, 1, 512>}, {pipeline_mode = #tpu.pipeline_mode<synchronous>, transform_indices = @transform_4, window_bounds = array<i64: 2, 8, 128>}]} {
    %c0_i32 = arith.constant 0 : i32
    %0 = arith.cmpi eq, %arg0, %c0_i32 : i32
    %1 = arith.extui %0 : i1 to i32
    %c0_i32_0 = arith.constant 0 : i32
    %2 = arith.cmpi ne, %1, %c0_i32_0 : i32
    scf.if %2 {
      %c0_182 = arith.constant 0 : index
      %c0_183 = arith.constant 0 : index
      %c0_184 = arith.constant 0 : index
      %332 = vector.load %arg1[%c0_182, %c0_183, %c0_184] : memref<2x8x128xf32, #tpu.memory_space<vmem>>, vector<2x8x128xf32>
      %c0_185 = arith.constant 0 : index
      %c0_186 = arith.constant 0 : index
      %c0_187 = arith.constant 0 : index
      %333 = vector.load %arg6[%c0_185, %c0_186, %c0_187] : memref<2x8x128xf32, #tpu.memory_space<vmem>>, vector<2x8x128xf32>
      tpu.vector_store %arg6[%c0_185, %c0_186, %c0_187], %332 {strides = array<i32>} : memref<2x8x128xf32, #tpu.memory_space<vmem>>, vector<2x8x128xf32>,
    } else {
    }
    %c0 = arith.constant 0 : index
    %c0_1 = arith.constant 0 : index
    %c0_2 = arith.constant 0 : index
    %3 = vector.load %arg6[%c0, %c0_1, %c0_2] : memref<2x8x128xf32, #tpu.memory_space<vmem>>, vector<2x8x128xf32>
    %c0_3 = arith.constant 0 : index
    %c0_4 = arith.constant 0 : index
    %c0_5 = arith.constant 0 : index
    %4 = vector.load %arg2[%c0_3, %c0_4, %c0_5] : memref<1x128x512xbf16, #tpu.memory_space<vmem>>, vector<1x128x512xbf16>
    %5 = vector.shape_cast %4 : vector<1x128x512xbf16> to vector<128x512xbf16>
    %c0_6 = arith.constant 0 : index
    %c0_7 = arith.constant 0 : index
    %c0_8 = arith.constant 0 : index
    %6 = vector.load %arg3[%c0_6, %c0_7, %c0_8] : memref<1x128x512xbf16, #tpu.memory_space<vmem>>, vector<1x128x512xbf16>
    %7 = vector.shape_cast %6 : vector<1x128x512xbf16> to vector<128x512xbf16>
    %c0_9 = arith.constant 0 : index
    %c0_10 = arith.constant 0 : index
    %c0_11 = arith.constant 0 : index
    %8 = vector.load %arg4[%c0_9, %c0_10, %c0_11] : memref<1x1x512xf32, #tpu.memory_space<vmem>>, vector<1x1x512xf32>
    %9 = vector.shape_cast %8 : vector<1x1x512xf32> to vector<1x512xf32>
    %10 = vector.shape_cast %3 : vector<2x8x128xf32> to vector<16x128xf32>
    %11 = arith.truncf %10 : vector<16x128xf32> to vector<16x128xbf16>
    %cst = arith.constant dense<0.000000e+00> : vector<16x512xf32>
    %12 = tpu.matmul %11, %5, %cst {dimension_numbers = #tpu.dot_dimension_numbers<[1], [0], [0], [1], [0, 0, 1, 1], [], []>} : vector<16x128xbf16>, vector<128x512xbf16>, vector<16x512xf32> -> vector<16x512xf32>
    %13 = vector.broadcast %9 : vector<1x512xf32> to vector<16x512xf32>
    %14 = arith.addf %12, %13 : vector<16x512xf32>
    %15 = vector.extract_strided_slice %14 {offsets = [0, 0], sizes = [8, 128], strides = [1, 1]} : vector<16x512xf32> to vector<8x128xf32>
    %c0_12 = arith.constant 0 : index
    %c0_13 = arith.constant 0 : index
    %c0_14 = arith.constant 0 : index
    %16 = vector.load %arg7[%c0_12, %c0_13, %c0_14] : memref<8x8x128xf32, #tpu.memory_space<vmem>>, vector<8x1x128xf32>
    %17 = vector.shape_cast %16 : vector<8x1x128xf32> to vector<8x128xf32>
    %18 = vector.shape_cast %15 : vector<8x128xf32> to vector<8x1x128xf32>
    tpu.vector_store %arg7[%c0_12, %c0_13, %c0_14], %18 {strides = array<i32>} : memref<8x8x128xf32, #tpu.memory_space<vmem>>, vector<8x1x128xf32>,
    %19 = vector.extract_strided_slice %14 {offsets = [8, 0], sizes = [8, 128], strides = [1, 1]} : vector<16x512xf32> to vector<8x128xf32>
    %c0_15 = arith.constant 0 : index
    %c1 = arith.constant 1 : index
    %c0_16 = arith.constant 0 : index
    %20 = vector.load %arg7[%c0_15, %c1, %c0_16] : memref<8x8x128xf32, #tpu.memory_space<vmem>>, vector<8x1x128xf32>
    %21 = vector.shape_cast %20 : vector<8x1x128xf32> to vector<8x128xf32>
    %22 = vector.shape_cast %19 : vector<8x128xf32> to vector<8x1x128xf32>
    tpu.vector_store %arg7[%c0_15, %c1, %c0_16], %22 {strides = array<i32>} : memref<8x8x128xf32, #tpu.memory_space<vmem>>, vector<8x1x128xf32>,
    %23 = vector.extract_strided_slice %14 {offsets = [0, 128], sizes = [8, 128], strides = [1, 1]} : vector<16x512xf32> to vector<8x128xf32>
    %c0_17 = arith.constant 0 : index
    %c2 = arith.constant 2 : index
    %c0_18 = arith.constant 0 : index
    %24 = vector.load %arg7[%c0_17, %c2, %c0_18] : memref<8x8x128xf32, #tpu.memory_space<vmem>>, vector<8x1x128xf32>
    %25 = vector.shape_cast %24 : vector<8x1x128xf32> to vector<8x128xf32>
    %26 = vector.shape_cast %23 : vector<8x128xf32> to vector<8x1x128xf32>
    tpu.vector_store %arg7[%c0_17, %c2, %c0_18], %26 {strides = array<i32>} : memref<8x8x128xf32, #tpu.memory_space<vmem>>, vector<8x1x128xf32>,
    %27 = vector.extract_strided_slice %14 {offsets = [8, 128], sizes = [8, 128], strides = [1, 1]} : vector<16x512xf32> to vector<8x128xf32>
    %c0_19 = arith.constant 0 : index
    %c3 = arith.constant 3 : index
    %c0_20 = arith.constant 0 : index
    %28 = vector.load %arg7[%c0_19, %c3, %c0_20] : memref<8x8x128xf32, #tpu.memory_space<vmem>>, vector<8x1x128xf32>
    %29 = vector.shape_cast %28 : vector<8x1x128xf32> to vector<8x128xf32>
    %30 = vector.shape_cast %27 : vector<8x128xf32> to vector<8x1x128xf32>
    tpu.vector_store %arg7[%c0_19, %c3, %c0_20], %30 {strides = array<i32>} : memref<8x8x128xf32, #tpu.memory_space<vmem>>, vector<8x1x128xf32>,
    %31 = vector.extract_strided_slice %14 {offsets = [0, 256], sizes = [8, 128], strides = [1, 1]} : vector<16x512xf32> to vector<8x128xf32>
    %c0_21 = arith.constant 0 : index
    %c4 = arith.constant 4 : index
    %c0_22 = arith.constant 0 : index
    %32 = vector.load %arg7[%c0_21, %c4, %c0_22] : memref<8x8x128xf32, #tpu.memory_space<vmem>>, vector<8x1x128xf32>
    %33 = vector.shape_cast %32 : vector<8x1x128xf32> to vector<8x128xf32>
    %34 = vector.shape_cast %31 : vector<8x128xf32> to vector<8x1x128xf32>
    tpu.vector_store %arg7[%c0_21, %c4, %c0_22], %34 {strides = array<i32>} : memref<8x8x128xf32, #tpu.memory_space<vmem>>, vector<8x1x128xf32>,
    %35 = vector.extract_strided_slice %14 {offsets = [8, 256], sizes = [8, 128], strides = [1, 1]} : vector<16x512xf32> to vector<8x128xf32>
    %c0_23 = arith.constant 0 : index
    %c5 = arith.constant 5 : index
    %c0_24 = arith.constant 0 : index
    %36 = vector.load %arg7[%c0_23, %c5, %c0_24] : memref<8x8x128xf32, #tpu.memory_space<vmem>>, vector<8x1x128xf32>
    %37 = vector.shape_cast %36 : vector<8x1x128xf32> to vector<8x128xf32>
    %38 = vector.shape_cast %35 : vector<8x128xf32> to vector<8x1x128xf32>
    tpu.vector_store %arg7[%c0_23, %c5, %c0_24], %38 {strides = array<i32>} : memref<8x8x128xf32, #tpu.memory_space<vmem>>, vector<8x1x128xf32>,
    %39 = vector.extract_strided_slice %14 {offsets = [0, 384], sizes = [8, 128], strides = [1, 1]} : vector<16x512xf32> to vector<8x128xf32>
    %c0_25 = arith.constant 0 : index
    %c6 = arith.constant 6 : index
    %c0_26 = arith.constant 0 : index
    %40 = vector.load %arg7[%c0_25, %c6, %c0_26] : memref<8x8x128xf32, #tpu.memory_space<vmem>>, vector<8x1x128xf32>
    %41 = vector.shape_cast %40 : vector<8x1x128xf32> to vector<8x128xf32>
    %42 = vector.shape_cast %39 : vector<8x128xf32> to vector<8x1x128xf32>
    tpu.vector_store %arg7[%c0_25, %c6, %c0_26], %42 {strides = array<i32>} : memref<8x8x128xf32, #tpu.memory_space<vmem>>, vector<8x1x128xf32>,
    %43 = vector.extract_strided_slice %14 {offsets = [8, 384], sizes = [8, 128], strides = [1, 1]} : vector<16x512xf32> to vector<8x128xf32>
    %c0_27 = arith.constant 0 : index
    %c7 = arith.constant 7 : index
    %c0_28 = arith.constant 0 : index
    %44 = vector.load %arg7[%c0_27, %c7, %c0_28] : memref<8x8x128xf32, #tpu.memory_space<vmem>>, vector<8x1x128xf32>
    %45 = vector.shape_cast %44 : vector<8x1x128xf32> to vector<8x128xf32>
    %46 = vector.shape_cast %43 : vector<8x128xf32> to vector<8x1x128xf32>
    tpu.vector_store %arg7[%c0_27, %c7, %c0_28], %46 {strides = array<i32>} : memref<8x8x128xf32, #tpu.memory_space<vmem>>, vector<8x1x128xf32>,
    %47 = tpu.iota {dimensions = array<i32: 0>} : vector<8x1xi32>
    %c4_i32 = arith.constant 4 : i32
    %48 = vector.broadcast %c4_i32 : i32 to vector<8x1xi32>
    %49 = arith.cmpi sge, %47, %48 : vector<8x1xi32>
    %c6_i32 = arith.constant 6 : i32
    %50 = vector.broadcast %c6_i32 : i32 to vector<8x1xi32>
    %51 = arith.cmpi slt, %47, %50 : vector<8x1xi32>
    %52 = arith.andi %49, %51 : vector<8x1xi1>
    %cst_29 = arith.constant 1.000000e+00 : f32
    %cst_30 = arith.constant 5.000000e-01 : f32
    %53 = vector.broadcast %cst_29 : f32 to vector<8x1xf32>
    %54 = vector.broadcast %cst_30 : f32 to vector<8x1xf32>
    %55 = arith.select %52, %53, %54 : vector<8x1xi1>, vector<8x1xf32>
    %cst_31 = arith.constant 0.000000e+00 : f32
    %cst_32 = arith.constant 5.000000e-01 : f32
    %56 = vector.broadcast %cst_31 : f32 to vector<8x1xf32>
    %57 = vector.broadcast %cst_32 : f32 to vector<8x1xf32>
    %58 = arith.select %52, %56, %57 : vector<8x1xi1>, vector<8x1xf32>
    %c0_33 = arith.constant 0 : index
    %c0_34 = arith.constant 0 : index
    %c0_35 = arith.constant 0 : index
    %59 = vector.load %arg7[%c0_33, %c0_34, %c0_35] : memref<8x8x128xf32, #tpu.memory_space<vmem>>, vector<1x8x128xf32>
    %60 = vector.shape_cast %59 : vector<1x8x128xf32> to vector<8x128xf32>
    %61 = vector.broadcast %55 : vector<8x1xf32> to vector<8x128xf32>
    %62 = arith.mulf %61, %60 : vector<8x128xf32>
    %63 = math.tanh %62 : vector<8x128xf32>
    %64 = vector.broadcast %55 : vector<8x1xf32> to vector<8x128xf32>
    %65 = arith.mulf %64, %63 : vector<8x128xf32>
    %66 = vector.broadcast %58 : vector<8x1xf32> to vector<8x128xf32>
    %67 = arith.addf %65, %66 : vector<8x128xf32>
    %68 = vector.extract_strided_slice %67 {offsets = [0, 0], sizes = [2, 128], strides = [1, 1]} : vector<8x128xf32> to vector<2x128xf32>
    %69 = vector.extract_strided_slice %67 {offsets = [4, 0], sizes = [2, 128], strides = [1, 1]} : vector<8x128xf32> to vector<2x128xf32>
    %70 = vector.extract_strided_slice %67 {offsets = [6, 0], sizes = [2, 128], strides = [1, 1]} : vector<8x128xf32> to vector<2x128xf32>
    %71 = arith.mulf %68, %69 : vector<2x128xf32>
    %72 = math.tanh %71 : vector<2x128xf32>
    %73 = arith.mulf %70, %72 : vector<2x128xf32>
    %c0_36 = arith.constant 0 : index
    %c0_37 = arith.constant 0 : index
    %c0_38 = arith.constant 0 : index
    %74 = vector.load %arg6[%c0_36, %c0_37, %c0_38] : memref<2x8x128xf32, #tpu.memory_space<vmem>>, vector<2x1x128xf32>
    %75 = vector.shape_cast %74 : vector<2x1x128xf32> to vector<2x128xf32>
    %76 = vector.shape_cast %73 : vector<2x128xf32> to vector<2x1x128xf32>
    tpu.vector_store %arg6[%c0_36, %c0_37, %c0_38], %76 {strides = array<i32>} : memref<2x8x128xf32, #tpu.memory_space<vmem>>, vector<2x1x128xf32>,
    %c0_39 = arith.constant 0 : index
    %c0_40 = arith.constant 0 : index
    %c0_41 = arith.constant 0 : index
    %77 = vector.load %arg5[%c0_39, %c0_40, %c0_41] : memref<2x8x128xf32, #tpu.memory_space<vmem>>, vector<2x1x128xf32>
    %78 = vector.shape_cast %77 : vector<2x1x128xf32> to vector<2x128xf32>
    %79 = vector.shape_cast %73 : vector<2x128xf32> to vector<2x1x128xf32>
    tpu.vector_store %arg5[%c0_39, %c0_40, %c0_41], %79 {strides = array<i32>} : memref<2x8x128xf32, #tpu.memory_space<vmem>>, vector<2x1x128xf32>,
    %80 = arith.truncf %73 : vector<2x128xf32> to vector<2x128xbf16>
    %cst_42 = arith.constant dense<0.000000e+00> : vector<2x512xf32>
    %81 = tpu.matmul %80, %7, %cst_42 {dimension_numbers = #tpu.dot_dimension_numbers<[1], [0], [0], [1], [0, 0, 1, 1], [], []>} : vector<2x128xbf16>, vector<128x512xbf16>, vector<2x512xf32> -> vector<2x512xf32>
    %82 = vector.extract_strided_slice %81 {offsets = [0, 0], sizes = [2, 128], strides = [1, 1]} : vector<2x512xf32> to vector<2x128xf32>
    %c0_43 = arith.constant 0 : index
    %c0_44 = arith.constant 0 : index
    %83 = vector.load %arg8[%c0_43, %c0_44] : memref<8x128xf32, #tpu.memory_space<vmem>>, vector<2x128xf32>
    tpu.vector_store %arg8[%c0_43, %c0_44], %82 {strides = array<i32>} : memref<8x128xf32, #tpu.memory_space<vmem>>, vector<2x128xf32>,
    %84 = vector.extract_strided_slice %81 {offsets = [0, 128], sizes = [2, 128], strides = [1, 1]} : vector<2x512xf32> to vector<2x128xf32>
    %c2_45 = arith.constant 2 : index
    %c0_46 = arith.constant 0 : index
    %85 = vector.load %arg8[%c2_45, %c0_46] : memref<8x128xf32, #tpu.memory_space<vmem>>, vector<2x128xf32>
    tpu.vector_store %arg8[%c2_45, %c0_46], %84 {strides = array<i32>} : memref<8x128xf32, #tpu.memory_space<vmem>>, vector<2x128xf32>,
    %86 = vector.extract_strided_slice %81 {offsets = [0, 256], sizes = [2, 128], strides = [1, 1]} : vector<2x512xf32> to vector<2x128xf32>
    %c4_47 = arith.constant 4 : index
    %c0_48 = arith.constant 0 : index
    %87 = vector.load %arg8[%c4_47, %c0_48] : memref<8x128xf32, #tpu.memory_space<vmem>>, vector<2x128xf32>
    tpu.vector_store %arg8[%c4_47, %c0_48], %86 {strides = array<i32>} : memref<8x128xf32, #tpu.memory_space<vmem>>, vector<2x128xf32>,
    %88 = vector.extract_strided_slice %81 {offsets = [0, 384], sizes = [2, 128], strides = [1, 1]} : vector<2x512xf32> to vector<2x128xf32>
    %c6_49 = arith.constant 6 : index
    %c0_50 = arith.constant 0 : index
    %89 = vector.load %arg8[%c6_49, %c0_50] : memref<8x128xf32, #tpu.memory_space<vmem>>, vector<2x128xf32>
    tpu.vector_store %arg8[%c6_49, %c0_50], %88 {strides = array<i32>} : memref<8x128xf32, #tpu.memory_space<vmem>>, vector<2x128xf32>,
    %c1_51 = arith.constant 1 : index
    %c0_52 = arith.constant 0 : index
    %c0_53 = arith.constant 0 : index
    %90 = vector.load %arg7[%c1_51, %c0_52, %c0_53] : memref<8x8x128xf32, #tpu.memory_space<vmem>>, vector<1x8x128xf32>
    %91 = vector.shape_cast %90 : vector<1x8x128xf32> to vector<8x128xf32>
    %c0_54 = arith.constant 0 : index
    %c0_55 = arith.constant 0 : index
    %92 = vector.load %arg8[%c0_54, %c0_55] : memref<8x128xf32, #tpu.memory_space<vmem>>, vector<8x128xf32>
    %93 = arith.addf %91, %92 : vector<8x128xf32>
    %94 = vector.broadcast %55 : vector<8x1xf32> to vector<8x128xf32>
    %95 = arith.mulf %94, %93 : vector<8x128xf32>
    %96 = math.tanh %95 : vector<8x128xf32>
    %97 = vector.broadcast %55 : vector<8x1xf32> to vector<8x128xf32>
    %98 = arith.mulf %97, %96 : vector<8x128xf32>
    %99 = vector.broadcast %58 : vector<8x1xf32> to vector<8x128xf32>
    %100 = arith.addf %98, %99 : vector<8x128xf32>
    %101 = vector.extract_strided_slice %100 {offsets = [0, 0], sizes = [2, 128], strides = [1, 1]} : vector<8x128xf32> to vector<2x128xf32>
    %102 = vector.extract_strided_slice %100 {offsets = [2, 0], sizes = [2, 128], strides = [1, 1]} : vector<8x128xf32> to vector<2x128xf32>
    %103 = vector.extract_strided_slice %100 {offsets = [4, 0], sizes = [2, 128], strides = [1, 1]} : vector<8x128xf32> to vector<2x128xf32>
    %104 = vector.extract_strided_slice %100 {offsets = [6, 0], sizes = [2, 128], strides = [1, 1]} : vector<8x128xf32> to vector<2x128xf32>
    %105 = arith.mulf %102, %71 : vector<2x128xf32>
    %106 = arith.mulf %101, %103 : vector<2x128xf32>
    %107 = arith.addf %105, %106 : vector<2x128xf32>
    %108 = math.tanh %107 : vector<2x128xf32>
    %109 = arith.mulf %104, %108 : vector<2x128xf32>
    %c0_56 = arith.constant 0 : index
    %c1_57 = arith.constant 1 : index
    %c0_58 = arith.constant 0 : index
    %110 = vector.load %arg6[%c0_56, %c1_57, %c0_58] : memref<2x8x128xf32, #tpu.memory_space<vmem>>, vector<2x1x128xf32>
    %111 = vector.shape_cast %110 : vector<2x1x128xf32> to vector<2x128xf32>
    %112 = vector.shape_cast %109 : vector<2x128xf32> to vector<2x1x128xf32>
    tpu.vector_store %arg6[%c0_56, %c1_57, %c0_58], %112 {strides = array<i32>} : memref<2x8x128xf32, #tpu.memory_space<vmem>>, vector<2x1x128xf32>,
    %c0_59 = arith.constant 0 : index
    %c1_60 = arith.constant 1 : index
    %c0_61 = arith.constant 0 : index
    %113 = vector.load %arg5[%c0_59, %c1_60, %c0_61] : memref<2x8x128xf32, #tpu.memory_space<vmem>>, vector<2x1x128xf32>
    %114 = vector.shape_cast %113 : vector<2x1x128xf32> to vector<2x128xf32>
    %115 = vector.shape_cast %109 : vector<2x128xf32> to vector<2x1x128xf32>
    tpu.vector_store %arg5[%c0_59, %c1_60, %c0_61], %115 {strides = array<i32>} : memref<2x8x128xf32, #tpu.memory_space<vmem>>, vector<2x1x128xf32>,
    %116 = arith.truncf %109 : vector<2x128xf32> to vector<2x128xbf16>
    %cst_62 = arith.constant dense<0.000000e+00> : vector<2x512xf32>
    %117 = tpu.matmul %116, %7, %cst_62 {dimension_numbers = #tpu.dot_dimension_numbers<[1], [0], [0], [1], [0, 0, 1, 1], [], []>} : vector<2x128xbf16>, vector<128x512xbf16>, vector<2x512xf32> -> vector<2x512xf32>
    %118 = vector.extract_strided_slice %117 {offsets = [0, 0], sizes = [2, 128], strides = [1, 1]} : vector<2x512xf32> to vector<2x128xf32>
    %c0_63 = arith.constant 0 : index
    %c0_64 = arith.constant 0 : index
    %119 = vector.load %arg8[%c0_63, %c0_64] : memref<8x128xf32, #tpu.memory_space<vmem>>, vector<2x128xf32>
    tpu.vector_store %arg8[%c0_63, %c0_64], %118 {strides = array<i32>} : memref<8x128xf32, #tpu.memory_space<vmem>>, vector<2x128xf32>,
    %120 = vector.extract_strided_slice %117 {offsets = [0, 128], sizes = [2, 128], strides = [1, 1]} : vector<2x512xf32> to vector<2x128xf32>
    %c2_65 = arith.constant 2 : index
    %c0_66 = arith.constant 0 : index
    %121 = vector.load %arg8[%c2_65, %c0_66] : memref<8x128xf32, #tpu.memory_space<vmem>>, vector<2x128xf32>
    tpu.vector_store %arg8[%c2_65, %c0_66], %120 {strides = array<i32>} : memref<8x128xf32, #tpu.memory_space<vmem>>, vector<2x128xf32>,
    %122 = vector.extract_strided_slice %117 {offsets = [0, 256], sizes = [2, 128], strides = [1, 1]} : vector<2x512xf32> to vector<2x128xf32>
    %c4_67 = arith.constant 4 : index
    %c0_68 = arith.constant 0 : index
    %123 = vector.load %arg8[%c4_67, %c0_68] : memref<8x128xf32, #tpu.memory_space<vmem>>, vector<2x128xf32>
    tpu.vector_store %arg8[%c4_67, %c0_68], %122 {strides = array<i32>} : memref<8x128xf32, #tpu.memory_space<vmem>>, vector<2x128xf32>,
    %124 = vector.extract_strided_slice %117 {offsets = [0, 384], sizes = [2, 128], strides = [1, 1]} : vector<2x512xf32> to vector<2x128xf32>
    %c6_69 = arith.constant 6 : index
    %c0_70 = arith.constant 0 : index
    %125 = vector.load %arg8[%c6_69, %c0_70] : memref<8x128xf32, #tpu.memory_space<vmem>>, vector<2x128xf32>
    tpu.vector_store %arg8[%c6_69, %c0_70], %124 {strides = array<i32>} : memref<8x128xf32, #tpu.memory_space<vmem>>, vector<2x128xf32>,
    %c2_71 = arith.constant 2 : index
    %c0_72 = arith.constant 0 : index
    %c0_73 = arith.constant 0 : index
    %126 = vector.load %arg7[%c2_71, %c0_72, %c0_73] : memref<8x8x128xf32, #tpu.memory_space<vmem>>, vector<1x8x128xf32>
    %127 = vector.shape_cast %126 : vector<1x8x128xf32> to vector<8x128xf32>
    %c0_74 = arith.constant 0 : index
    %c0_75 = arith.constant 0 : index
    %128 = vector.load %arg8[%c0_74, %c0_75] : memref<8x128xf32, #tpu.memory_space<vmem>>, vector<8x128xf32>
    %129 = arith.addf %127, %128 : vector<8x128xf32>
    %130 = vector.broadcast %55 : vector<8x1xf32> to vector<8x128xf32>
    %131 = arith.mulf %130, %129 : vector<8x128xf32>
    %132 = math.tanh %131 : vector<8x128xf32>
    %133 = vector.broadcast %55 : vector<8x1xf32> to vector<8x128xf32>
    %134 = arith.mulf %133, %132 : vector<8x128xf32>
    %135 = vector.broadcast %58 : vector<8x1xf32> to vector<8x128xf32>
    %136 = arith.addf %134, %135 : vector<8x128xf32>
    %137 = vector.extract_strided_slice %136 {offsets = [0, 0], sizes = [2, 128], strides = [1, 1]} : vector<8x128xf32> to vector<2x128xf32>
    %138 = vector.extract_strided_slice %136 {offsets = [2, 0], sizes = [2, 128], strides = [1, 1]} : vector<8x128xf32> to vector<2x128xf32>
    %139 = vector.extract_strided_slice %136 {offsets = [4, 0], sizes = [2, 128], strides = [1, 1]} : vector<8x128xf32> to vector<2x128xf32>
    %140 = vector.extract_strided_slice %136 {offsets = [6, 0], sizes = [2, 128], strides = [1, 1]} : vector<8x128xf32> to vector<2x128xf32>
    %141 = arith.mulf %138, %107 : vector<2x128xf32>
    %142 = arith.mulf %137, %139 : vector<2x128xf32>
    %143 = arith.addf %141, %142 : vector<2x128xf32>
    %144 = math.tanh %143 : vector<2x128xf32>
    %145 = arith.mulf %140, %144 : vector<2x128xf32>
    %c0_76 = arith.constant 0 : index
    %c2_77 = arith.constant 2 : index
    %c0_78 = arith.constant 0 : index
    %146 = vector.load %arg6[%c0_76, %c2_77, %c0_78] : memref<2x8x128xf32, #tpu.memory_space<vmem>>, vector<2x1x128xf32>
    %147 = vector.shape_cast %146 : vector<2x1x128xf32> to vector<2x128xf32>
    %148 = vector.shape_cast %145 : vector<2x128xf32> to vector<2x1x128xf32>
    tpu.vector_store %arg6[%c0_76, %c2_77, %c0_78], %148 {strides = array<i32>} : memref<2x8x128xf32, #tpu.memory_space<vmem>>, vector<2x1x128xf32>,
    %c0_79 = arith.constant 0 : index
    %c2_80 = arith.constant 2 : index
    %c0_81 = arith.constant 0 : index
    %149 = vector.load %arg5[%c0_79, %c2_80, %c0_81] : memref<2x8x128xf32, #tpu.memory_space<vmem>>, vector<2x1x128xf32>
    %150 = vector.shape_cast %149 : vector<2x1x128xf32> to vector<2x128xf32>
    %151 = vector.shape_cast %145 : vector<2x128xf32> to vector<2x1x128xf32>
    tpu.vector_store %arg5[%c0_79, %c2_80, %c0_81], %151 {strides = array<i32>} : memref<2x8x128xf32, #tpu.memory_space<vmem>>, vector<2x1x128xf32>,
    %152 = arith.truncf %145 : vector<2x128xf32> to vector<2x128xbf16>
    %cst_82 = arith.constant dense<0.000000e+00> : vector<2x512xf32>
    %153 = tpu.matmul %152, %7, %cst_82 {dimension_numbers = #tpu.dot_dimension_numbers<[1], [0], [0], [1], [0, 0, 1, 1], [], []>} : vector<2x128xbf16>, vector<128x512xbf16>, vector<2x512xf32> -> vector<2x512xf32>
    %154 = vector.extract_strided_slice %153 {offsets = [0, 0], sizes = [2, 128], strides = [1, 1]} : vector<2x512xf32> to vector<2x128xf32>
    %c0_83 = arith.constant 0 : index
    %c0_84 = arith.constant 0 : index
    %155 = vector.load %arg8[%c0_83, %c0_84] : memref<8x128xf32, #tpu.memory_space<vmem>>, vector<2x128xf32>
    tpu.vector_store %arg8[%c0_83, %c0_84], %154 {strides = array<i32>} : memref<8x128xf32, #tpu.memory_space<vmem>>, vector<2x128xf32>,
    %156 = vector.extract_strided_slice %153 {offsets = [0, 128], sizes = [2, 128], strides = [1, 1]} : vector<2x512xf32> to vector<2x128xf32>
    %c2_85 = arith.constant 2 : index
    %c0_86 = arith.constant 0 : index
    %157 = vector.load %arg8[%c2_85, %c0_86] : memref<8x128xf32, #tpu.memory_space<vmem>>, vector<2x128xf32>
    tpu.vector_store %arg8[%c2_85, %c0_86], %156 {strides = array<i32>} : memref<8x128xf32, #tpu.memory_space<vmem>>, vector<2x128xf32>,
    %158 = vector.extract_strided_slice %153 {offsets = [0, 256], sizes = [2, 128], strides = [1, 1]} : vector<2x512xf32> to vector<2x128xf32>
    %c4_87 = arith.constant 4 : index
    %c0_88 = arith.constant 0 : index
    %159 = vector.load %arg8[%c4_87, %c0_88] : memref<8x128xf32, #tpu.memory_space<vmem>>, vector<2x128xf32>
    tpu.vector_store %arg8[%c4_87, %c0_88], %158 {strides = array<i32>} : memref<8x128xf32, #tpu.memory_space<vmem>>, vector<2x128xf32>,
    %160 = vector.extract_strided_slice %153 {offsets = [0, 384], sizes = [2, 128], strides = [1, 1]} : vector<2x512xf32> to vector<2x128xf32>
    %c6_89 = arith.constant 6 : index
    %c0_90 = arith.constant 0 : index
    %161 = vector.load %arg8[%c6_89, %c0_90] : memref<8x128xf32, #tpu.memory_space<vmem>>, vector<2x128xf32>
    tpu.vector_store %arg8[%c6_89, %c0_90], %160 {strides = array<i32>} : memref<8x128xf32, #tpu.memory_space<vmem>>, vector<2x128xf32>,
    %c3_91 = arith.constant 3 : index
    %c0_92 = arith.constant 0 : index
    %c0_93 = arith.constant 0 : index
    %162 = vector.load %arg7[%c3_91, %c0_92, %c0_93] : memref<8x8x128xf32, #tpu.memory_space<vmem>>, vector<1x8x128xf32>
    %163 = vector.shape_cast %162 : vector<1x8x128xf32> to vector<8x128xf32>
    %c0_94 = arith.constant 0 : index
    %c0_95 = arith.constant 0 : index
    %164 = vector.load %arg8[%c0_94, %c0_95] : memref<8x128xf32, #tpu.memory_space<vmem>>, vector<8x128xf32>
    %165 = arith.addf %163, %164 : vector<8x128xf32>
    %166 = vector.broadcast %55 : vector<8x1xf32> to vector<8x128xf32>
    %167 = arith.mulf %166, %165 : vector<8x128xf32>
    %168 = math.tanh %167 : vector<8x128xf32>
    %169 = vector.broadcast %55 : vector<8x1xf32> to vector<8x128xf32>
    %170 = arith.mulf %169, %168 : vector<8x128xf32>
    %171 = vector.broadcast %58 : vector<8x1xf32> to vector<8x128xf32>
    %172 = arith.addf %170, %171 : vector<8x128xf32>
    %173 = vector.extract_strided_slice %172 {offsets = [0, 0], sizes = [2, 128], strides = [1, 1]} : vector<8x128xf32> to vector<2x128xf32>
    %174 = vector.extract_strided_slice %172 {offsets = [2, 0], sizes = [2, 128], strides = [1, 1]} : vector<8x128xf32> to vector<2x128xf32>
    %175 = vector.extract_strided_slice %172 {offsets = [4, 0], sizes = [2, 128], strides = [1, 1]} : vector<8x128xf32> to vector<2x128xf32>
    %176 = vector.extract_strided_slice %172 {offsets = [6, 0], sizes = [2, 128], strides = [1, 1]} : vector<8x128xf32> to vector<2x128xf32>
    %177 = arith.mulf %174, %143 : vector<2x128xf32>
    %178 = arith.mulf %173, %175 : vector<2x128xf32>
    %179 = arith.addf %177, %178 : vector<2x128xf32>
    %180 = math.tanh %179 : vector<2x128xf32>
    %181 = arith.mulf %176, %180 : vector<2x128xf32>
    %c0_96 = arith.constant 0 : index
    %c3_97 = arith.constant 3 : index
    %c0_98 = arith.constant 0 : index
    %182 = vector.load %arg6[%c0_96, %c3_97, %c0_98] : memref<2x8x128xf32, #tpu.memory_space<vmem>>, vector<2x1x128xf32>
    %183 = vector.shape_cast %182 : vector<2x1x128xf32> to vector<2x128xf32>
    %184 = vector.shape_cast %181 : vector<2x128xf32> to vector<2x1x128xf32>
    tpu.vector_store %arg6[%c0_96, %c3_97, %c0_98], %184 {strides = array<i32>} : memref<2x8x128xf32, #tpu.memory_space<vmem>>, vector<2x1x128xf32>,
    %c0_99 = arith.constant 0 : index
    %c3_100 = arith.constant 3 : index
    %c0_101 = arith.constant 0 : index
    %185 = vector.load %arg5[%c0_99, %c3_100, %c0_101] : memref<2x8x128xf32, #tpu.memory_space<vmem>>, vector<2x1x128xf32>
    %186 = vector.shape_cast %185 : vector<2x1x128xf32> to vector<2x128xf32>
    %187 = vector.shape_cast %181 : vector<2x128xf32> to vector<2x1x128xf32>
    tpu.vector_store %arg5[%c0_99, %c3_100, %c0_101], %187 {strides = array<i32>} : memref<2x8x128xf32, #tpu.memory_space<vmem>>, vector<2x1x128xf32>,
    %188 = arith.truncf %181 : vector<2x128xf32> to vector<2x128xbf16>
    %cst_102 = arith.constant dense<0.000000e+00> : vector<2x512xf32>
    %189 = tpu.matmul %188, %7, %cst_102 {dimension_numbers = #tpu.dot_dimension_numbers<[1], [0], [0], [1], [0, 0, 1, 1], [], []>} : vector<2x128xbf16>, vector<128x512xbf16>, vector<2x512xf32> -> vector<2x512xf32>
    %190 = vector.extract_strided_slice %189 {offsets = [0, 0], sizes = [2, 128], strides = [1, 1]} : vector<2x512xf32> to vector<2x128xf32>
    %c0_103 = arith.constant 0 : index
    %c0_104 = arith.constant 0 : index
    %191 = vector.load %arg8[%c0_103, %c0_104] : memref<8x128xf32, #tpu.memory_space<vmem>>, vector<2x128xf32>
    tpu.vector_store %arg8[%c0_103, %c0_104], %190 {strides = array<i32>} : memref<8x128xf32, #tpu.memory_space<vmem>>, vector<2x128xf32>,
    %192 = vector.extract_strided_slice %189 {offsets = [0, 128], sizes = [2, 128], strides = [1, 1]} : vector<2x512xf32> to vector<2x128xf32>
    %c2_105 = arith.constant 2 : index
    %c0_106 = arith.constant 0 : index
    %193 = vector.load %arg8[%c2_105, %c0_106] : memref<8x128xf32, #tpu.memory_space<vmem>>, vector<2x128xf32>
    tpu.vector_store %arg8[%c2_105, %c0_106], %192 {strides = array<i32>} : memref<8x128xf32, #tpu.memory_space<vmem>>, vector<2x128xf32>,
    %194 = vector.extract_strided_slice %189 {offsets = [0, 256], sizes = [2, 128], strides = [1, 1]} : vector<2x512xf32> to vector<2x128xf32>
    %c4_107 = arith.constant 4 : index
    %c0_108 = arith.constant 0 : index
    %195 = vector.load %arg8[%c4_107, %c0_108] : memref<8x128xf32, #tpu.memory_space<vmem>>, vector<2x128xf32>
    tpu.vector_store %arg8[%c4_107, %c0_108], %194 {strides = array<i32>} : memref<8x128xf32, #tpu.memory_space<vmem>>, vector<2x128xf32>,
    %196 = vector.extract_strided_slice %189 {offsets = [0, 384], sizes = [2, 128], strides = [1, 1]} : vector<2x512xf32> to vector<2x128xf32>
    %c6_109 = arith.constant 6 : index
    %c0_110 = arith.constant 0 : index
    %197 = vector.load %arg8[%c6_109, %c0_110] : memref<8x128xf32, #tpu.memory_space<vmem>>, vector<2x128xf32>
    tpu.vector_store %arg8[%c6_109, %c0_110], %196 {strides = array<i32>} : memref<8x128xf32, #tpu.memory_space<vmem>>, vector<2x128xf32>,
    %c4_111 = arith.constant 4 : index
    %c0_112 = arith.constant 0 : index
    %c0_113 = arith.constant 0 : index
    %198 = vector.load %arg7[%c4_111, %c0_112, %c0_113] : memref<8x8x128xf32, #tpu.memory_space<vmem>>, vector<1x8x128xf32>
    %199 = vector.shape_cast %198 : vector<1x8x128xf32> to vector<8x128xf32>
    %c0_114 = arith.constant 0 : index
    %c0_115 = arith.constant 0 : index
    %200 = vector.load %arg8[%c0_114, %c0_115] : memref<8x128xf32, #tpu.memory_space<vmem>>, vector<8x128xf32>
    %201 = arith.addf %199, %200 : vector<8x128xf32>
    %202 = vector.broadcast %55 : vector<8x1xf32> to vector<8x128xf32>
    %203 = arith.mulf %202, %201 : vector<8x128xf32>
    %204 = math.tanh %203 : vector<8x128xf32>
    %205 = vector.broadcast %55 : vector<8x1xf32> to vector<8x128xf32>
    %206 = arith.mulf %205, %204 : vector<8x128xf32>
    %207 = vector.broadcast %58 : vector<8x1xf32> to vector<8x128xf32>
    %208 = arith.addf %206, %207 : vector<8x128xf32>
    %209 = vector.extract_strided_slice %208 {offsets = [0, 0], sizes = [2, 128], strides = [1, 1]} : vector<8x128xf32> to vector<2x128xf32>
    %210 = vector.extract_strided_slice %208 {offsets = [2, 0], sizes = [2, 128], strides = [1, 1]} : vector<8x128xf32> to vector<2x128xf32>
    %211 = vector.extract_strided_slice %208 {offsets = [4, 0], sizes = [2, 128], strides = [1, 1]} : vector<8x128xf32> to vector<2x128xf32>
    %212 = vector.extract_strided_slice %208 {offsets = [6, 0], sizes = [2, 128], strides = [1, 1]} : vector<8x128xf32> to vector<2x128xf32>
    %213 = arith.mulf %210, %179 : vector<2x128xf32>
    %214 = arith.mulf %209, %211 : vector<2x128xf32>
    %215 = arith.addf %213, %214 : vector<2x128xf32>
    %216 = math.tanh %215 : vector<2x128xf32>
    %217 = arith.mulf %212, %216 : vector<2x128xf32>
    %c0_116 = arith.constant 0 : index
    %c4_117 = arith.constant 4 : index
    %c0_118 = arith.constant 0 : index
    %218 = vector.load %arg6[%c0_116, %c4_117, %c0_118] : memref<2x8x128xf32, #tpu.memory_space<vmem>>, vector<2x1x128xf32>
    %219 = vector.shape_cast %218 : vector<2x1x128xf32> to vector<2x128xf32>
    %220 = vector.shape_cast %217 : vector<2x128xf32> to vector<2x1x128xf32>
    tpu.vector_store %arg6[%c0_116, %c4_117, %c0_118], %220 {strides = array<i32>} : memref<2x8x128xf32, #tpu.memory_space<vmem>>, vector<2x1x128xf32>,
    %c0_119 = arith.constant 0 : index
    %c4_120 = arith.constant 4 : index
    %c0_121 = arith.constant 0 : index
    %221 = vector.load %arg5[%c0_119, %c4_120, %c0_121] : memref<2x8x128xf32, #tpu.memory_space<vmem>>, vector<2x1x128xf32>
    %222 = vector.shape_cast %221 : vector<2x1x128xf32> to vector<2x128xf32>
    %223 = vector.shape_cast %217 : vector<2x128xf32> to vector<2x1x128xf32>
    tpu.vector_store %arg5[%c0_119, %c4_120, %c0_121], %223 {strides = array<i32>} : memref<2x8x128xf32, #tpu.memory_space<vmem>>, vector<2x1x128xf32>,
    %224 = arith.truncf %217 : vector<2x128xf32> to vector<2x128xbf16>
    %cst_122 = arith.constant dense<0.000000e+00> : vector<2x512xf32>
    %225 = tpu.matmul %224, %7, %cst_122 {dimension_numbers = #tpu.dot_dimension_numbers<[1], [0], [0], [1], [0, 0, 1, 1], [], []>} : vector<2x128xbf16>, vector<128x512xbf16>, vector<2x512xf32> -> vector<2x512xf32>
    %226 = vector.extract_strided_slice %225 {offsets = [0, 0], sizes = [2, 128], strides = [1, 1]} : vector<2x512xf32> to vector<2x128xf32>
    %c0_123 = arith.constant 0 : index
    %c0_124 = arith.constant 0 : index
    %227 = vector.load %arg8[%c0_123, %c0_124] : memref<8x128xf32, #tpu.memory_space<vmem>>, vector<2x128xf32>
    tpu.vector_store %arg8[%c0_123, %c0_124], %226 {strides = array<i32>} : memref<8x128xf32, #tpu.memory_space<vmem>>, vector<2x128xf32>,
    %228 = vector.extract_strided_slice %225 {offsets = [0, 128], sizes = [2, 128], strides = [1, 1]} : vector<2x512xf32> to vector<2x128xf32>
    %c2_125 = arith.constant 2 : index
    %c0_126 = arith.constant 0 : index
    %229 = vector.load %arg8[%c2_125, %c0_126] : memref<8x128xf32, #tpu.memory_space<vmem>>, vector<2x128xf32>
    tpu.vector_store %arg8[%c2_125, %c0_126], %228 {strides = array<i32>} : memref<8x128xf32, #tpu.memory_space<vmem>>, vector<2x128xf32>,
    %230 = vector.extract_strided_slice %225 {offsets = [0, 256], sizes = [2, 128], strides = [1, 1]} : vector<2x512xf32> to vector<2x128xf32>
    %c4_127 = arith.constant 4 : index
    %c0_128 = arith.constant 0 : index
    %231 = vector.load %arg8[%c4_127, %c0_128] : memref<8x128xf32, #tpu.memory_space<vmem>>, vector<2x128xf32>
    tpu.vector_store %arg8[%c4_127, %c0_128], %230 {strides = array<i32>} : memref<8x128xf32, #tpu.memory_space<vmem>>, vector<2x128xf32>,
    %232 = vector.extract_strided_slice %225 {offsets = [0, 384], sizes = [2, 128], strides = [1, 1]} : vector<2x512xf32> to vector<2x128xf32>
    %c6_129 = arith.constant 6 : index
    %c0_130 = arith.constant 0 : index
    %233 = vector.load %arg8[%c6_129, %c0_130] : memref<8x128xf32, #tpu.memory_space<vmem>>, vector<2x128xf32>
    tpu.vector_store %arg8[%c6_129, %c0_130], %232 {strides = array<i32>} : memref<8x128xf32, #tpu.memory_space<vmem>>, vector<2x128xf32>,
    %c5_131 = arith.constant 5 : index
    %c0_132 = arith.constant 0 : index
    %c0_133 = arith.constant 0 : index
    %234 = vector.load %arg7[%c5_131, %c0_132, %c0_133] : memref<8x8x128xf32, #tpu.memory_space<vmem>>, vector<1x8x128xf32>
    %235 = vector.shape_cast %234 : vector<1x8x128xf32> to vector<8x128xf32>
    %c0_134 = arith.constant 0 : index
    %c0_135 = arith.constant 0 : index
    %236 = vector.load %arg8[%c0_134, %c0_135] : memref<8x128xf32, #tpu.memory_space<vmem>>, vector<8x128xf32>
    %237 = arith.addf %235, %236 : vector<8x128xf32>
    %238 = vector.broadcast %55 : vector<8x1xf32> to vector<8x128xf32>
    %239 = arith.mulf %238, %237 : vector<8x128xf32>
    %240 = math.tanh %239 : vector<8x128xf32>
    %241 = vector.broadcast %55 : vector<8x1xf32> to vector<8x128xf32>
    %242 = arith.mulf %241, %240 : vector<8x128xf32>
    %243 = vector.broadcast %58 : vector<8x1xf32> to vector<8x128xf32>
    %244 = arith.addf %242, %243 : vector<8x128xf32>
    %245 = vector.extract_strided_slice %244 {offsets = [0, 0], sizes = [2, 128], strides = [1, 1]} : vector<8x128xf32> to vector<2x128xf32>
    %246 = vector.extract_strided_slice %244 {offsets = [2, 0], sizes = [2, 128], strides = [1, 1]} : vector<8x128xf32> to vector<2x128xf32>
    %247 = vector.extract_strided_slice %244 {offsets = [4, 0], sizes = [2, 128], strides = [1, 1]} : vector<8x128xf32> to vector<2x128xf32>
    %248 = vector.extract_strided_slice %244 {offsets = [6, 0], sizes = [2, 128], strides = [1, 1]} : vector<8x128xf32> to vector<2x128xf32>
    %249 = arith.mulf %246, %215 : vector<2x128xf32>
    %250 = arith.mulf %245, %247 : vector<2x128xf32>
    %251 = arith.addf %249, %250 : vector<2x128xf32>
    %252 = math.tanh %251 : vector<2x128xf32>
    %253 = arith.mulf %248, %252 : vector<2x128xf32>
    %c0_136 = arith.constant 0 : index
    %c5_137 = arith.constant 5 : index
    %c0_138 = arith.constant 0 : index
    %254 = vector.load %arg6[%c0_136, %c5_137, %c0_138] : memref<2x8x128xf32, #tpu.memory_space<vmem>>, vector<2x1x128xf32>
    %255 = vector.shape_cast %254 : vector<2x1x128xf32> to vector<2x128xf32>
    %256 = vector.shape_cast %253 : vector<2x128xf32> to vector<2x1x128xf32>
    tpu.vector_store %arg6[%c0_136, %c5_137, %c0_138], %256 {strides = array<i32>} : memref<2x8x128xf32, #tpu.memory_space<vmem>>, vector<2x1x128xf32>,
    %c0_139 = arith.constant 0 : index
    %c5_140 = arith.constant 5 : index
    %c0_141 = arith.constant 0 : index
    %257 = vector.load %arg5[%c0_139, %c5_140, %c0_141] : memref<2x8x128xf32, #tpu.memory_space<vmem>>, vector<2x1x128xf32>
    %258 = vector.shape_cast %257 : vector<2x1x128xf32> to vector<2x128xf32>
    %259 = vector.shape_cast %253 : vector<2x128xf32> to vector<2x1x128xf32>
    tpu.vector_store %arg5[%c0_139, %c5_140, %c0_141], %259 {strides = array<i32>} : memref<2x8x128xf32, #tpu.memory_space<vmem>>, vector<2x1x128xf32>,
    %260 = arith.truncf %253 : vector<2x128xf32> to vector<2x128xbf16>
    %cst_142 = arith.constant dense<0.000000e+00> : vector<2x512xf32>
    %261 = tpu.matmul %260, %7, %cst_142 {dimension_numbers = #tpu.dot_dimension_numbers<[1], [0], [0], [1], [0, 0, 1, 1], [], []>} : vector<2x128xbf16>, vector<128x512xbf16>, vector<2x512xf32> -> vector<2x512xf32>
    %262 = vector.extract_strided_slice %261 {offsets = [0, 0], sizes = [2, 128], strides = [1, 1]} : vector<2x512xf32> to vector<2x128xf32>
    %c0_143 = arith.constant 0 : index
    %c0_144 = arith.constant 0 : index
    %263 = vector.load %arg8[%c0_143, %c0_144] : memref<8x128xf32, #tpu.memory_space<vmem>>, vector<2x128xf32>
    tpu.vector_store %arg8[%c0_143, %c0_144], %262 {strides = array<i32>} : memref<8x128xf32, #tpu.memory_space<vmem>>, vector<2x128xf32>,
    %264 = vector.extract_strided_slice %261 {offsets = [0, 128], sizes = [2, 128], strides = [1, 1]} : vector<2x512xf32> to vector<2x128xf32>
    %c2_145 = arith.constant 2 : index
    %c0_146 = arith.constant 0 : index
    %265 = vector.load %arg8[%c2_145, %c0_146] : memref<8x128xf32, #tpu.memory_space<vmem>>, vector<2x128xf32>
    tpu.vector_store %arg8[%c2_145, %c0_146], %264 {strides = array<i32>} : memref<8x128xf32, #tpu.memory_space<vmem>>, vector<2x128xf32>,
    %266 = vector.extract_strided_slice %261 {offsets = [0, 256], sizes = [2, 128], strides = [1, 1]} : vector<2x512xf32> to vector<2x128xf32>
    %c4_147 = arith.constant 4 : index
    %c0_148 = arith.constant 0 : index
    %267 = vector.load %arg8[%c4_147, %c0_148] : memref<8x128xf32, #tpu.memory_space<vmem>>, vector<2x128xf32>
    tpu.vector_store %arg8[%c4_147, %c0_148], %266 {strides = array<i32>} : memref<8x128xf32, #tpu.memory_space<vmem>>, vector<2x128xf32>,
    %268 = vector.extract_strided_slice %261 {offsets = [0, 384], sizes = [2, 128], strides = [1, 1]} : vector<2x512xf32> to vector<2x128xf32>
    %c6_149 = arith.constant 6 : index
    %c0_150 = arith.constant 0 : index
    %269 = vector.load %arg8[%c6_149, %c0_150] : memref<8x128xf32, #tpu.memory_space<vmem>>, vector<2x128xf32>
    tpu.vector_store %arg8[%c6_149, %c0_150], %268 {strides = array<i32>} : memref<8x128xf32, #tpu.memory_space<vmem>>, vector<2x128xf32>,
    %c6_151 = arith.constant 6 : index
    %c0_152 = arith.constant 0 : index
    %c0_153 = arith.constant 0 : index
    %270 = vector.load %arg7[%c6_151, %c0_152, %c0_153] : memref<8x8x128xf32, #tpu.memory_space<vmem>>, vector<1x8x128xf32>
    %271 = vector.shape_cast %270 : vector<1x8x128xf32> to vector<8x128xf32>
    %c0_154 = arith.constant 0 : index
    %c0_155 = arith.constant 0 : index
    %272 = vector.load %arg8[%c0_154, %c0_155] : memref<8x128xf32, #tpu.memory_space<vmem>>, vector<8x128xf32>
    %273 = arith.addf %271, %272 : vector<8x128xf32>
    %274 = vector.broadcast %55 : vector<8x1xf32> to vector<8x128xf32>
    %275 = arith.mulf %274, %273 : vector<8x128xf32>
    %276 = math.tanh %275 : vector<8x128xf32>
    %277 = vector.broadcast %55 : vector<8x1xf32> to vector<8x128xf32>
    %278 = arith.mulf %277, %276 : vector<8x128xf32>
    %279 = vector.broadcast %58 : vector<8x1xf32> to vector<8x128xf32>
    %280 = arith.addf %278, %279 : vector<8x128xf32>
    %281 = vector.extract_strided_slice %280 {offsets = [0, 0], sizes = [2, 128], strides = [1, 1]} : vector<8x128xf32> to vector<2x128xf32>
    %282 = vector.extract_strided_slice %280 {offsets = [2, 0], sizes = [2, 128], strides = [1, 1]} : vector<8x128xf32> to vector<2x128xf32>
    %283 = vector.extract_strided_slice %280 {offsets = [4, 0], sizes = [2, 128], strides = [1, 1]} : vector<8x128xf32> to vector<2x128xf32>
    %284 = vector.extract_strided_slice %280 {offsets = [6, 0], sizes = [2, 128], strides = [1, 1]} : vector<8x128xf32> to vector<2x128xf32>
    %285 = arith.mulf %282, %251 : vector<2x128xf32>
    %286 = arith.mulf %281, %283 : vector<2x128xf32>
    %287 = arith.addf %285, %286 : vector<2x128xf32>
    %288 = math.tanh %287 : vector<2x128xf32>
    %289 = arith.mulf %284, %288 : vector<2x128xf32>
    %c0_156 = arith.constant 0 : index
    %c6_157 = arith.constant 6 : index
    %c0_158 = arith.constant 0 : index
    %290 = vector.load %arg6[%c0_156, %c6_157, %c0_158] : memref<2x8x128xf32, #tpu.memory_space<vmem>>, vector<2x1x128xf32>
    %291 = vector.shape_cast %290 : vector<2x1x128xf32> to vector<2x128xf32>
    %292 = vector.shape_cast %289 : vector<2x128xf32> to vector<2x1x128xf32>
    tpu.vector_store %arg6[%c0_156, %c6_157, %c0_158], %292 {strides = array<i32>} : memref<2x8x128xf32, #tpu.memory_space<vmem>>, vector<2x1x128xf32>,
    %c0_159 = arith.constant 0 : index
    %c6_160 = arith.constant 6 : index
    %c0_161 = arith.constant 0 : index
    %293 = vector.load %arg5[%c0_159, %c6_160, %c0_161] : memref<2x8x128xf32, #tpu.memory_space<vmem>>, vector<2x1x128xf32>
    %294 = vector.shape_cast %293 : vector<2x1x128xf32> to vector<2x128xf32>
    %295 = vector.shape_cast %289 : vector<2x128xf32> to vector<2x1x128xf32>
    tpu.vector_store %arg5[%c0_159, %c6_160, %c0_161], %295 {strides = array<i32>} : memref<2x8x128xf32, #tpu.memory_space<vmem>>, vector<2x1x128xf32>,
    %296 = arith.truncf %289 : vector<2x128xf32> to vector<2x128xbf16>
    %cst_162 = arith.constant dense<0.000000e+00> : vector<2x512xf32>
    %297 = tpu.matmul %296, %7, %cst_162 {dimension_numbers = #tpu.dot_dimension_numbers<[1], [0], [0], [1], [0, 0, 1, 1], [], []>} : vector<2x128xbf16>, vector<128x512xbf16>, vector<2x512xf32> -> vector<2x512xf32>
    %298 = vector.extract_strided_slice %297 {offsets = [0, 0], sizes = [2, 128], strides = [1, 1]} : vector<2x512xf32> to vector<2x128xf32>
    %c0_163 = arith.constant 0 : index
    %c0_164 = arith.constant 0 : index
    %299 = vector.load %arg8[%c0_163, %c0_164] : memref<8x128xf32, #tpu.memory_space<vmem>>, vector<2x128xf32>
    tpu.vector_store %arg8[%c0_163, %c0_164], %298 {strides = array<i32>} : memref<8x128xf32, #tpu.memory_space<vmem>>, vector<2x128xf32>,
    %300 = vector.extract_strided_slice %297 {offsets = [0, 128], sizes = [2, 128], strides = [1, 1]} : vector<2x512xf32> to vector<2x128xf32>
    %c2_165 = arith.constant 2 : index
    %c0_166 = arith.constant 0 : index
    %301 = vector.load %arg8[%c2_165, %c0_166] : memref<8x128xf32, #tpu.memory_space<vmem>>, vector<2x128xf32>
    tpu.vector_store %arg8[%c2_165, %c0_166], %300 {strides = array<i32>} : memref<8x128xf32, #tpu.memory_space<vmem>>, vector<2x128xf32>,
    %302 = vector.extract_strided_slice %297 {offsets = [0, 256], sizes = [2, 128], strides = [1, 1]} : vector<2x512xf32> to vector<2x128xf32>
    %c4_167 = arith.constant 4 : index
    %c0_168 = arith.constant 0 : index
    %303 = vector.load %arg8[%c4_167, %c0_168] : memref<8x128xf32, #tpu.memory_space<vmem>>, vector<2x128xf32>
    tpu.vector_store %arg8[%c4_167, %c0_168], %302 {strides = array<i32>} : memref<8x128xf32, #tpu.memory_space<vmem>>, vector<2x128xf32>,
    %304 = vector.extract_strided_slice %297 {offsets = [0, 384], sizes = [2, 128], strides = [1, 1]} : vector<2x512xf32> to vector<2x128xf32>
    %c6_169 = arith.constant 6 : index
    %c0_170 = arith.constant 0 : index
    %305 = vector.load %arg8[%c6_169, %c0_170] : memref<8x128xf32, #tpu.memory_space<vmem>>, vector<2x128xf32>
    tpu.vector_store %arg8[%c6_169, %c0_170], %304 {strides = array<i32>} : memref<8x128xf32, #tpu.memory_space<vmem>>, vector<2x128xf32>,
    %c7_171 = arith.constant 7 : index
    %c0_172 = arith.constant 0 : index
    %c0_173 = arith.constant 0 : index
    %306 = vector.load %arg7[%c7_171, %c0_172, %c0_173] : memref<8x8x128xf32, #tpu.memory_space<vmem>>, vector<1x8x128xf32>
    %307 = vector.shape_cast %306 : vector<1x8x128xf32> to vector<8x128xf32>
    %c0_174 = arith.constant 0 : index
    %c0_175 = arith.constant 0 : index
    %308 = vector.load %arg8[%c0_174, %c0_175] : memref<8x128xf32, #tpu.memory_space<vmem>>, vector<8x128xf32>
    %309 = arith.addf %307, %308 : vector<8x128xf32>
    %310 = vector.broadcast %55 : vector<8x1xf32> to vector<8x128xf32>
    %311 = arith.mulf %310, %309 : vector<8x128xf32>
    %312 = math.tanh %311 : vector<8x128xf32>
    %313 = vector.broadcast %55 : vector<8x1xf32> to vector<8x128xf32>
    %314 = arith.mulf %313, %312 : vector<8x128xf32>
    %315 = vector.broadcast %58 : vector<8x1xf32> to vector<8x128xf32>
    %316 = arith.addf %314, %315 : vector<8x128xf32>
    %317 = vector.extract_strided_slice %316 {offsets = [0, 0], sizes = [2, 128], strides = [1, 1]} : vector<8x128xf32> to vector<2x128xf32>
    %318 = vector.extract_strided_slice %316 {offsets = [2, 0], sizes = [2, 128], strides = [1, 1]} : vector<8x128xf32> to vector<2x128xf32>
    %319 = vector.extract_strided_slice %316 {offsets = [4, 0], sizes = [2, 128], strides = [1, 1]} : vector<8x128xf32> to vector<2x128xf32>
    %320 = vector.extract_strided_slice %316 {offsets = [6, 0], sizes = [2, 128], strides = [1, 1]} : vector<8x128xf32> to vector<2x128xf32>
    %321 = arith.mulf %318, %287 : vector<2x128xf32>
    %322 = arith.mulf %317, %319 : vector<2x128xf32>
    %323 = arith.addf %321, %322 : vector<2x128xf32>
    %324 = math.tanh %323 : vector<2x128xf32>
    %325 = arith.mulf %320, %324 : vector<2x128xf32>
    %c0_176 = arith.constant 0 : index
    %c7_177 = arith.constant 7 : index
    %c0_178 = arith.constant 0 : index
    %326 = vector.load %arg6[%c0_176, %c7_177, %c0_178] : memref<2x8x128xf32, #tpu.memory_space<vmem>>, vector<2x1x128xf32>
    %327 = vector.shape_cast %326 : vector<2x1x128xf32> to vector<2x128xf32>
    %328 = vector.shape_cast %325 : vector<2x128xf32> to vector<2x1x128xf32>
    tpu.vector_store %arg6[%c0_176, %c7_177, %c0_178], %328 {strides = array<i32>} : memref<2x8x128xf32, #tpu.memory_space<vmem>>, vector<2x1x128xf32>,
    %c0_179 = arith.constant 0 : index
    %c7_180 = arith.constant 7 : index
    %c0_181 = arith.constant 0 : index
    %329 = vector.load %arg5[%c0_179, %c7_180, %c0_181] : memref<2x8x128xf32, #tpu.memory_space<vmem>>, vector<2x1x128xf32>
    %330 = vector.shape_cast %329 : vector<2x1x128xf32> to vector<2x128xf32>
    %331 = vector.shape_cast %325 : vector<2x128xf32> to vector<2x1x128xf32>
    tpu.vector_store %arg5[%c0_179, %c7_180, %c0_181], %331 {strides = array<i32>} : memref<2x8x128xf32, #tpu.memory_space<vmem>>, vector<2x1x128xf32>,
    return
  }
  func.func @transform_0(%arg0: i32) -> (i32, i32, i32) {
    %c0_i32 = arith.constant 0 : i32
    %c0_i32_0 = arith.constant 0 : i32
    %c0_i32_1 = arith.constant 0 : i32
    %c0_i32_2 = arith.constant 0 : i32
    return %c0_i32, %c0_i32_0, %c0_i32_1 : i32, i32, i32
  }
  func.func @transform_1(%arg0: i32) -> (i32, i32, i32) {
    %c0_i32 = arith.constant 0 : i32
    %c0_i32_0 = arith.constant 0 : i32
    %c0_i32_1 = arith.constant 0 : i32
    return %arg0, %c0_i32, %c0_i32_0 : i32, i32, i32
  }
  func.func @transform_2(%arg0: i32) -> (i32, i32, i32) {
    %c0_i32 = arith.constant 0 : i32
    %c0_i32_0 = arith.constant 0 : i32
    %c0_i32_1 = arith.constant 0 : i32
    return %arg0, %c0_i32, %c0_i32_0 : i32, i32, i32
  }
  func.func @transform_3(%arg0: i32) -> (i32, i32, i32) {
    %c0_i32 = arith.constant 0 : i32
    %c0_i32_0 = arith.constant 0 : i32
    %c0_i32_1 = arith.constant 0 : i32
    return %arg0, %c0_i32, %c0_i32_0 : i32, i32, i32
  }
  func.func @transform_4(%arg0: i32) -> (i32, i32, i32) {
    %c0_i32 = arith.constant 0 : i32
    %c0_i32_0 = arith.constant 0 : i32
    %c0_i32_1 = arith.constant 0 : i32
    %c0_i32_2 = arith.constant 0 : i32
    return %c0_i32, %c0_i32_0, %c0_i32_1 : i32, i32, i32
  }
}

</mosaic_0001>

<llo_original>
// kernel: textrnn_forward.1
$region0: #{textrnn_forward.1}
  #allocation0 [shape = 'u32[]', space=smem, size = 0x4, offset = 0x4, fixed_abs, tag = 'smem constant byte address 0x4 - core index']
  #allocation1 [shape = 'u32[144,128]{1,0:T(1,128)}', space=vmem, size = 0x12000, scoped, tag = 'internal scratch']
  #allocation2 [shape = 'f32[2,8,128]{2,1,0:T(8,128)}', space=vmem, size = 0x2000, scoped, tag = 'scratch operand']
  #allocation3 [shape = 'f32[8,8,128]{2,1,0:T(8,128)}', space=vmem, size = 0x8000, scoped, tag = 'scratch operand']
  #allocation4 [shape = 'f32[8,128]{1,0:T(8,128)}', space=vmem, size = 0x1000, scoped, tag = 'scratch operand']
  %s0 = inlined_call_operand.vmem [shape: f32[2,8,128], index: 0, kind: input, shape index: {}]
  %s1 = inlined_call_operand.vmem [shape: bf16[2,128,512], index: 1, kind: input, shape index: {}]
  %s2 = inlined_call_operand.vmem [shape: bf16[2,128,512], index: 2, kind: input, shape index: {}]
  %s3 = inlined_call_operand.vmem [shape: f32[2,1,512], index: 3, kind: input, shape index: {}]
  %s4 = inlined_call_operand.hbm [shape: f32[2,8,128], index: 4, kind: output, shape index: {}]
  %s5 = sld [smem:[#allocation0]]
  $region53: #{textrnn_forward.1} parent=0
    _
  %s7 = ssub.s32 1, %s5
  %s8 = scalar_select 0, %s7, %s5
  $region1: #{textrnn_forward.1} parent=0
    #allocation5 [shape = 'u8[8192]{0}', space=vmem, size = 0x2000, scoped, tag = 'output window, operand 0, single buffered']
    #allocation6 [shape = 's32[2]{0}', space=sflag, size = 0x8, scoped, tag = 'scoped memory for textrnn_forward.1']
    %9 = vsyncpa [#allocation6], 0
    loop: start=0, step=1, limit=4
    $region2: #{textrnn_forward.1} parent=1 // loop_pre_header
      _
    $region3: #{textrnn_forward.1} parent=1 // loop_header
      %s11 = sphi 0, %s15
      %p12 = scmp.ge.s32.totalorder %s11, 4
      %s19 = sphi 0, %s19
      %s21 = sphi 0, %s19
      %s22 = sphi 0, %s21
      %s36 = sphi 0, %s22
      %s42 = sphi 0, %s44
      %s45 = sphi 0, %s42
      %s46 = sphi 0, %s45
      %s62 = sphi 0, %s46
      %s68 = sphi 0, %s70
      %s71 = sphi 0, %s68
      %s72 = sphi 0, %s71
      %s88 = sphi 0, %s72
      %s94 = sphi 0, %s96
      %s97 = sphi 0, %s94
      %s98 = sphi 0, %s97
      %s114 = sphi 0, %s98
      %s118 = sphi 0, %s118
      %s120 = sphi 0, %s118
      %s121 = sphi 0, %s120
      %s135 = sphi 0, %s121
    $region4: #{textrnn_forward.1} parent=1 // loop_header_branch
      %14 = sbr.rel (%p12) target = $region8
    $region5: #{textrnn_forward.1} parent=1 // loop_body
      %s16 = ssub.s32 %s11, 1
      %s17 = ssub.s32 %s11, 2
      %s18 = sadd.s32 %s11, 1
      %s20 = sadd.s32 %s19, 1
      %p23 = scmp.eq.s32.totalorder %s11, 1
      %p24 = scmp.ne.s32.totalorder %s19, %s21
      %p25 = scmp.eq.s32.totalorder %s11, 0
      %p26 = por %p24, %p25
      %p27 = scmp.ne.s32.totalorder %s19, %s21
      %p28 = scmp.eq.s32.totalorder %s16, 1
      %p29 = por %p27, %p28
      %p30 = scmp.ne.s32.totalorder %s21, %s22
      %p31 = scmp.eq.s32.totalorder %s16, 0
      %p32 = por %p30, %p31
      %p33 = scmp.ne.s32.totalorder %s21, %s22
      %p34 = scmp.eq.s32.totalorder %s17, 1
      %p35 = por %p33, %p34
      %p37 = scmp.ne.s32.totalorder %s22, %s36
      %p38 = scmp.eq.s32.totalorder %s17, 0
      %p39 = por %p37, %p38
      %s40 = ssub.s32 %s11, %s18
      %p41 = scmp.eq.s32.totalorder %s40, 0
      %s43 = sadd.s32 %s42, 1
      %s44 = scalar_select %p41, %s42, %s43
      %p47 = pneg %p41
      %p48 = scmp.eq.s32.totalorder %s11, 1
      %p49 = por %p47, %p48
      %p50 = scmp.ne.s32.totalorder %s42, %s45
      %p51 = scmp.eq.s32.totalorder %s11, 0
      %p52 = por %p50, %p51
      %p53 = scmp.ne.s32.totalorder %s42, %s45
      %p54 = scmp.eq.s32.totalorder %s16, 1
      %p55 = por %p53, %p54
      %p56 = scmp.ne.s32.totalorder %s45, %s46
      %p57 = scmp.eq.s32.totalorder %s16, 0
      %p58 = por %p56, %p57
      %p59 = scmp.ne.s32.totalorder %s45, %s46
      %p60 = scmp.eq.s32.totalorder %s17, 1
      %p61 = por %p59, %p60
      %p63 = scmp.ne.s32.totalorder %s46, %s62
      %p64 = scmp.eq.s32.totalorder %s17, 0
      %p65 = por %p63, %p64
      %s66 = ssub.s32 %s11, %s18
      %p67 = scmp.eq.s32.totalorder %s66, 0
      %s69 = sadd.s32 %s68, 1
      %s70 = scalar_select %p67, %s68, %s69
      %p73 = pneg %p67
      %p74 = scmp.eq.s32.totalorder %s11, 1
      %p75 = por %p73, %p74
      %p76 = scmp.ne.s32.totalorder %s68, %s71
      %p77 = scmp.eq.s32.totalorder %s11, 0
      %p78 = por %p76, %p77
      %p79 = scmp.ne.s32.totalorder %s68, %s71
      %p80 = scmp.eq.s32.totalorder %s16, 1
      %p81 = por %p79, %p80
      %p82 = scmp.ne.s32.totalorder %s71, %s72
      %p83 = scmp.eq.s32.totalorder %s16, 0
      %p84 = por %p82, %p83
      %p85 = scmp.ne.s32.totalorder %s71, %s72
      %p86 = scmp.eq.s32.totalorder %s17, 1
      %p87 = por %p85, %p86
      %p89 = scmp.ne.s32.totalorder %s72, %s88
      %p90 = scmp.eq.s32.totalorder %s17, 0
      %p91 = por %p89, %p90
      %s92 = ssub.s32 %s11, %s18
      %p93 = scmp.eq.s32.totalorder %s92, 0
      %s95 = sadd.s32 %s94, 1
      %s96 = scalar_select %p93, %s94, %s95
      %p99 = pneg %p93
      %p100 = scmp.eq.s32.totalorder %s11, 1
      %p101 = por %p99, %p100
      %p102 = scmp.ne.s32.totalorder %s94, %s97
      %p103 = scmp.eq.s32.totalorder %s11, 0
      %p104 = por %p102, %p103
      %p105 = scmp.ne.s32.totalorder %s94, %s97
      %p106 = scmp.eq.s32.totalorder %s16, 1
      %p107 = por %p105, %p106
      %p108 = scmp.ne.s32.totalorder %s97, %s98
      %p109 = scmp.eq.s32.totalorder %s16, 0
      %p110 = por %p108, %p109
      %p111 = scmp.ne.s32.totalorder %s97, %s98
      %p112 = scmp.eq.s32.totalorder %s17, 1
      %p113 = por %p111, %p112
      %p115 = scmp.ne.s32.totalorder %s98, %s114
      %p116 = scmp.eq.s32.totalorder %s17, 0
      %p117 = por %p115, %p116
      %s119 = sadd.s32 %s118, 1
      %p122 = scmp.eq.s32.totalorder %s11, 1
      %p123 = scmp.ne.s32.totalorder %s118, %s120
      %p124 = scmp.eq.s32.totalorder %s11, 0
      %p125 = por %p123, %p124
      %p126 = scmp.ne.s32.totalorder %s118, %s120
      %p127 = scmp.eq.s32.totalorder %s16, 1
      %p128 = por %p126, %p127
      %p129 = scmp.ne.s32.totalorder %s120, %s121
      %p130 = scmp.eq.s32.totalorder %s16, 0
      %p131 = por %p129, %p130
      %p132 = scmp.ne.s32.totalorder %s120, %s121
      %p133 = scmp.eq.s32.totalorder %s17, 1
      %p134 = por %p132, %p133
      %p136 = scmp.ne.s32.totalorder %s121, %s135
      %p137 = scmp.eq.s32.totalorder %s17, 0
      %p138 = por %p136, %p137
      %p139 = scmp.le.s32.totalorder 1, %s11
      %p140 = scmp.lt.s32.totalorder %s11, 3
      %p141 = pnand %p139, %p140
      %p142 = pneg %p141
      // Predicated region
      $region9: #{textrnn_forward.1} parent=5 // pred_check
        _
      $region10: #{textrnn_forward.1} parent=5 // pred_check_branch
        %144 = sbr.rel (%p141) target = $region12
      $region11: #{textrnn_forward.1} parent=5 // pred_region
        %s145 = ssub.s32 %s11, 1
        // Predicated region
        $region13: #{textrnn_forward.1} parent=11 // pred_check
          %p146 = pneg %p32
        $region14: #{textrnn_forward.1} parent=11 // pred_check_branch
          %148 = sbr.rel (%p146) target = $region16
        $region15: #{textrnn_forward.1} parent=11 // pred_region
          _
        $region16: #{textrnn_forward.1} parent=11 // pred_fallthru
          _
      $region12: #{textrnn_forward.1} parent=5 // pred_fallthru
        _
      %p149 = scmp.lt.s32.totalorder %s11, 2
      // Predicated region
      $region17: #{textrnn_forward.1} parent=5 // pred_check
        %p150 = pneg %p149
      $region18: #{textrnn_forward.1} parent=5 // pred_check_branch
        %152 = sbr.rel (%p150) target = $region20
      $region19: #{textrnn_forward.1} parent=5 // pred_region
        // Predicated region
        $region21: #{textrnn_forward.1} parent=19 // pred_check
          %p153 = pneg %p52
        $region22: #{textrnn_forward.1} parent=19 // pred_check_branch
          %155 = sbr.rel (%p153) target = $region24
        $region23: #{textrnn_forward.1} parent=19 // pred_region
          %p156 = scmp.lt.s32.totalorder %s11, 1
          %s157 = scalar_select %p156, %s11, 1
          %s158 = smul.addr %s157, 64
          %s159 = smul.addr %s158, 4
          %s160 = scalar_lea.vmem %s1, %s159
        $region24: #{textrnn_forward.1} parent=19 // pred_fallthru
          _
        // Predicated region
        $region25: #{textrnn_forward.1} parent=19 // pred_check
          %p161 = pneg %p78
        $region26: #{textrnn_forward.1} parent=19 // pred_check_branch
          %163 = sbr.rel (%p161) target = $region28
        $region27: #{textrnn_forward.1} parent=19 // pred_region
          %p164 = scmp.lt.s32.totalorder %s11, 1
          %s165 = scalar_select %p164, %s11, 1
          %s166 = smul.addr %s165, 64
          %s167 = smul.addr %s166, 4
          %s168 = scalar_lea.vmem %s2, %s167
        $region28: #{textrnn_forward.1} parent=19 // pred_fallthru
          _
        // Predicated region
        $region29: #{textrnn_forward.1} parent=19 // pred_check
          %p169 = pneg %p104
        $region30: #{textrnn_forward.1} parent=19 // pred_check_branch
          %171 = sbr.rel (%p169) target = $region32
        $region31: #{textrnn_forward.1} parent=19 // pred_region
          %p172 = scmp.lt.s32.totalorder %s11, 1
          %s173 = scalar_select %p172, %s11, 1
          %s174 = smul.addr %s173, 4
          %s175 = scalar_lea.vmem %s3, %s174
        $region32: #{textrnn_forward.1} parent=19 // pred_fallthru
          _
      $region20: #{textrnn_forward.1} parent=5 // pred_fallthru
        _
      %p176 = scmp.le.s32.totalorder 1, %s11
      %p177 = scmp.lt.s32.totalorder %s11, 3
      %p178 = pnand %p176, %p177
      %p179 = pneg %p178
      // Predicated region
      $region33: #{textrnn_forward.1} parent=5 // pred_check
        _
      $region34: #{textrnn_forward.1} parent=5 // pred_check_branch
        %181 = sbr.rel (%p178) target = $region36
      $region35: #{textrnn_forward.1} parent=5 // pred_region
        %s182 = ssub.s32 %s11, 1
        %p183 = pneg %p32
        %p184 = pneg %p29
        %p185 = scmp.lt.s32.totalorder %s16, 1
        %s186 = scalar_select %p185, %s16, 1
        %s187 = smul.addr %s186, 64
        %s188 = smul.addr %s187, 4
        %s189 = scalar_lea.vmem %s1, %s188
        %p190 = pneg %p58
        %p191 = pneg %p55
        %p192 = scmp.lt.s32.totalorder %s16, 1
        %s193 = scalar_select %p192, %s16, 1
        %s194 = smul.addr %s193, 64
        %s195 = smul.addr %s194, 4
        %s196 = scalar_lea.vmem %s2, %s195
        %p197 = pneg %p84
        %p198 = pneg %p81
        %p199 = scmp.lt.s32.totalorder %s16, 1
        %s200 = scalar_select %p199, %s16, 1
        %s201 = smul.addr %s200, 4
        %s202 = scalar_lea.vmem %s3, %s201
        %p203 = pneg %p110
        %p204 = pneg %p107
        %p205 = pneg %p131
        %p206 = pneg %p128
        %p207 = scmp.lt.s32.totalorder %s16, 1
        %s208 = scalar_select %p207, %s16, 1
        %s209 = smul.addr %s208, 64
        %s210 = smul.addr %s209, 4
        %s211 = scalar_lea.vmem %s1, %s210
        %p212 = scmp.lt.s32.totalorder %s16, 1
        %s213 = scalar_select %p212, %s16, 1
        %s214 = smul.addr %s213, 64
        %s215 = smul.addr %s214, 4
        %s216 = scalar_lea.vmem %s2, %s215
        %p217 = scmp.lt.s32.totalorder %s16, 1
        %s218 = scalar_select %p217, %s16, 1
        %s219 = smul.addr %s218, 4
        %s220 = scalar_lea.vmem %s3, %s219
        %p222 = scmp.eq.s32.totalorder %s16, 0
        // Predicated region
        $region37: #{textrnn_forward.1} parent=35 // pred_check
          %p223 = pneg %p222
        $region38: #{textrnn_forward.1} parent=35 // pred_check_branch
          %225 = sbr.rel (%p223) target = $region40
        $region39: #{textrnn_forward.1} parent=35 // pred_region
          %v226 = vld [vmem:[%s0] sm:$0xff]
          %v227 = vld [vmem:[%s0 + $0x8] sm:$0xff]
          %228 = vst [vmem:[#allocation2] sm:$0xff] %v226
          %229 = vst [vmem:[#allocation2 + $0x8] sm:$0xff] %v227
        $region40: #{textrnn_forward.1} parent=35 // pred_fallthru
          _
        %v230 = vld [vmem:[#allocation2] sm:$0xff]
        %v231 = vld [vmem:[#allocation2 + $0x8] sm:$0xff]
        %v232 = vld [vmem:[%s211] sm:$0xff]
        %v233 = vld [vmem:[%s211 + $0x8] sm:$0xff]
        %v234 = vld [vmem:[%s211 + $0x10] sm:$0xff]
        %v235 = vld [vmem:[%s211 + $0x18] sm:$0xff]
        %v236 = vld [vmem:[%s211 + $0x20] sm:$0xff]
        %v237 = vld [vmem:[%s211 + $0x28] sm:$0xff]
        %v238 = vld [vmem:[%s211 + $0x30] sm:$0xff]
        %v239 = vld [vmem:[%s211 + $0x38] sm:$0xff]
        %v240 = vld [vmem:[%s211 + $0x40] sm:$0xff]
        %v241 = vld [vmem:[%s211 + $0x48] sm:$0xff]
        %v242 = vld [vmem:[%s211 + $0x50] sm:$0xff]
        %v243 = vld [vmem:[%s211 + $0x58] sm:$0xff]
        %v244 = vld [vmem:[%s211 + $0x60] sm:$0xff]
        %v245 = vld [vmem:[%s211 + $0x68] sm:$0xff]
        %v246 = vld [vmem:[%s211 + $0x70] sm:$0xff]
        %v247 = vld [vmem:[%s211 + $0x78] sm:$0xff]
        %v248 = vld [vmem:[%s211 + $0x80] sm:$0xff]
        %v249 = vld [vmem:[%s211 + $0x88] sm:$0xff]
        %v250 = vld [vmem:[%s211 + $0x90] sm:$0xff]
        %v251 = vld [vmem:[%s211 + $0x98] sm:$0xff]
        %v252 = vld [vmem:[%s211 + $0xa0] sm:$0xff]
        %v253 = vld [vmem:[%s211 + $0xa8] sm:$0xff]
        %v254 = vld [vmem:[%s211 + $0xb0] sm:$0xff]
        %v255 = vld [vmem:[%s211 + $0xb8] sm:$0xff]
        %v256 = vld [vmem:[%s211 + $0xc0] sm:$0xff]
        %v257 = vld [vmem:[%s211 + $0xc8] sm:$0xff]
        %v258 = vld [vmem:[%s211 + $0xd0] sm:$0xff]
        %v259 = vld [vmem:[%s211 + $0xd8] sm:$0xff]
        %v260 = vld [vmem:[%s211 + $0xe0] sm:$0xff]
        %v261 = vld [vmem:[%s211 + $0xe8] sm:$0xff]
        %v262 = vld [vmem:[%s211 + $0xf0] sm:$0xff]
        %v263 = vld [vmem:[%s211 + $0xf8] sm:$0xff]
        %v264 = vld [vmem:[%s216] sm:$0xff]
        %v265 = vld [vmem:[%s216 + $0x8] sm:$0xff]
        %v266 = vld [vmem:[%s216 + $0x10] sm:$0xff]
        %v267 = vld [vmem:[%s216 + $0x18] sm:$0xff]
        %v268 = vld [vmem:[%s216 + $0x20] sm:$0xff]
        %v269 = vld [vmem:[%s216 + $0x28] sm:$0xff]
        %v270 = vld [vmem:[%s216 + $0x30] sm:$0xff]
        %v271 = vld [vmem:[%s216 + $0x38] sm:$0xff]
        %v272 = vld [vmem:[%s216 + $0x40] sm:$0xff]
        %v273 = vld [vmem:[%s216 + $0x48] sm:$0xff]
        %v274 = vld [vmem:[%s216 + $0x50] sm:$0xff]
        %v275 = vld [vmem:[%s216 + $0x58] sm:$0xff]
        %v276 = vld [vmem:[%s216 + $0x60] sm:$0xff]
        %v277 = vld [vmem:[%s216 + $0x68] sm:$0xff]
        %v278 = vld [vmem:[%s216 + $0x70] sm:$0xff]
        %v279 = vld [vmem:[%s216 + $0x78] sm:$0xff]
        %v280 = vld [vmem:[%s216 + $0x80] sm:$0xff]
        %v281 = vld [vmem:[%s216 + $0x88] sm:$0xff]
        %v282 = vld [vmem:[%s216 + $0x90] sm:$0xff]
        %v283 = vld [vmem:[%s216 + $0x98] sm:$0xff]
        %v284 = vld [vmem:[%s216 + $0xa0] sm:$0xff]
        %v285 = vld [vmem:[%s216 + $0xa8] sm:$0xff]
        %v286 = vld [vmem:[%s216 + $0xb0] sm:$0xff]
        %v287 = vld [vmem:[%s216 + $0xb8] sm:$0xff]
        %v288 = vld [vmem:[%s216 + $0xc0] sm:$0xff]
        %v289 = vld [vmem:[%s216 + $0xc8] sm:$0xff]
        %v290 = vld [vmem:[%s216 + $0xd0] sm:$0xff]
        %v291 = vld [vmem:[%s216 + $0xd8] sm:$0xff]
        %v292 = vld [vmem:[%s216 + $0xe0] sm:$0xff]
        %v293 = vld [vmem:[%s216 + $0xe8] sm:$0xff]
        %v294 = vld [vmem:[%s216 + $0xf0] sm:$0xff]
        %v295 = vld [vmem:[%s216 + $0xf8] sm:$0xff]
        %v296 = vld [vmem:[%s220] sm:$0xf]
        %v297 = vpack.c.bf16 %v231, %v230
        %v299 = vlaneseq
        %v300 = vshrl.u32 %v299, 7
        %v301 = vsub.s32 0, %v300
        %v302 = vrot.slane %v296, %v301
        %v303 = vlaneseq
        %v304 = vshrl.u32 %v303, 7
        %v305 = vsub.s32 1, %v304
        %v306 = vrot.slane %v296, %v305
        %v307 = vlaneseq
        %v308 = vshrl.u32 %v307, 7
        %v309 = vsub.s32 2, %v308
        %v310 = vrot.slane %v296, %v309
        %v311 = vlaneseq
        %v312 = vshrl.u32 %v311, 7
        %v313 = vsub.s32 3, %v312
        %v314 = vrot.slane %v296, %v313
        %v351 = vunpack.c.l.b16 %v232
        %v352 = vunpack.c.h.b16 %v232
        %v353 = vunpack.c.l.b16 %v233
        %v354 = vunpack.c.h.b16 %v233
        %v355 = vunpack.c.l.b16 %v234
        %v356 = vunpack.c.h.b16 %v234
        %v357 = vunpack.c.l.b16 %v235
        %v358 = vunpack.c.h.b16 %v235
        %v359 = vunpack.c.l.b16 %v236
        %v360 = vunpack.c.h.b16 %v236
        %v361 = vunpack.c.l.b16 %v237
        %v362 = vunpack.c.h.b16 %v237
        %v363 = vunpack.c.l.b16 %v238
        %v364 = vunpack.c.h.b16 %v238
        %v365 = vunpack.c.l.b16 %v239
        %v366 = vunpack.c.h.b16 %v239
        %v367 = vunpack.c.l.b16 %v240
        %v368 = vunpack.c.h.b16 %v240
        %v369 = vunpack.c.l.b16 %v241
        %v370 = vunpack.c.h.b16 %v241
        %v371 = vunpack.c.l.b16 %v242
        %v372 = vunpack.c.h.b16 %v242
        %v373 = vunpack.c.l.b16 %v243
        %v374 = vunpack.c.h.b16 %v243
        %v375 = vunpack.c.l.b16 %v244
        %v376 = vunpack.c.h.b16 %v244
        %v377 = vunpack.c.l.b16 %v245
        %v378 = vunpack.c.h.b16 %v245
        %v379 = vunpack.c.l.b16 %v246
        %v380 = vunpack.c.h.b16 %v246
        %v381 = vunpack.c.l.b16 %v247
        %v382 = vunpack.c.h.b16 %v247
        %v383 = vunpack.c.l.b16 %v248
        %v384 = vunpack.c.h.b16 %v248
        %v385 = vunpack.c.l.b16 %v249
        %v386 = vunpack.c.h.b16 %v249
        %v387 = vunpack.c.l.b16 %v250
        %v388 = vunpack.c.h.b16 %v250
        %v389 = vunpack.c.l.b16 %v251
        %v390 = vunpack.c.h.b16 %v251
        %v391 = vunpack.c.l.b16 %v252
        %v392 = vunpack.c.h.b16 %v252
        %v393 = vunpack.c.l.b16 %v253
        %v394 = vunpack.c.h.b16 %v253
        %v395 = vunpack.c.l.b16 %v254
        %v396 = vunpack.c.h.b16 %v254
        %v397 = vunpack.c.l.b16 %v255
        %v398 = vunpack.c.h.b16 %v255
        %v399 = vunpack.c.l.b16 %v256
        %v400 = vunpack.c.h.b16 %v256
        %v401 = vunpack.c.l.b16 %v257
        %v402 = vunpack.c.h.b16 %v257
        %v403 = vunpack.c.l.b16 %v258
        %v404 = vunpack.c.h.b16 %v258
        %v405 = vunpack.c.l.b16 %v259
        %v406 = vunpack.c.h.b16 %v259
        %v407 = vunpack.c.l.b16 %v260
        %v408 = vunpack.c.h.b16 %v260
        %v409 = vunpack.c.l.b16 %v261
        %v410 = vunpack.c.h.b16 %v261
        %v411 = vunpack.c.l.b16 %v262
        %v412 = vunpack.c.h.b16 %v262
        %v413 = vunpack.c.l.b16 %v263
        %v414 = vunpack.c.h.b16 %v263
        %v415 = vpack.c.b16 %v355, %v351
        %v416 = vpack.c.b16 %v356, %v352
        %v417 = vpack.c.b16 %v357, %v353
        %v418 = vpack.c.b16 %v358, %v354
        %v419 = vpack.c.b16 %v363, %v359
        %v420 = vpack.c.b16 %v364, %v360
        %v421 = vpack.c.b16 %v365, %v361
        %v422 = vpack.c.b16 %v366, %v362
        %v423 = vpack.c.b16 %v371, %v367
        %v424 = vpack.c.b16 %v372, %v368
        %v425 = vpack.c.b16 %v373, %v369
        %v426 = vpack.c.b16 %v374, %v370
        %v427 = vpack.c.b16 %v379, %v375
        %v428 = vpack.c.b16 %v380, %v376
        %v429 = vpack.c.b16 %v381, %v377
        %v430 = vpack.c.b16 %v382, %v378
        %v431 = vpack.c.b16 %v387, %v383
        %v432 = vpack.c.b16 %v388, %v384
        %v433 = vpack.c.b16 %v389, %v385
        %v434 = vpack.c.b16 %v390, %v386
        %v435 = vpack.c.b16 %v395, %v391
        %v436 = vpack.c.b16 %v396, %v392
        %v437 = vpack.c.b16 %v397, %v393
        %v438 = vpack.c.b16 %v398, %v394
        %v439 = vpack.c.b16 %v403, %v399
        %v440 = vpack.c.b16 %v404, %v400
        %v441 = vpack.c.b16 %v405, %v401
        %v442 = vpack.c.b16 %v406, %v402
        %v443 = vpack.c.b16 %v411, %v407
        %v444 = vpack.c.b16 %v412, %v408
        %v445 = vpack.c.b16 %v413, %v409
        %v446 = vpack.c.b16 %v414, %v410
        %479 = vmatprep.subr.bf16.mxu0 %v444
        %480 = vmatpush1.bf16.msra.mxu0 %v443
        %481 = vmatprep.subr.bf16.mxu0 %v440
        %482 = vmatpush1.bf16.msra.mxu0 %v439
        %483 = vmatprep.subr.bf16.mxu0 %v436
        %484 = vmatpush1.bf16.msra.mxu0 %v435
        %485 = vmatprep.subr.bf16.mxu0 %v432
        %486 = vmatpush1.bf16.msra.mxu0 %v431
        %487 = vmatprep.subr.bf16.mxu0 %v428
        %488 = vmatpush1.bf16.msra.mxu0 %v427
        %489 = vmatprep.subr.bf16.mxu0 %v424
        %490 = vmatpush1.bf16.msra.mxu0 %v423
        %491 = vmatprep.subr.bf16.mxu0 %v420
        %492 = vmatpush1.bf16.msra.mxu0 %v419
        %493 = vmatprep.subr.bf16.mxu0 %v416
        %494 = vmatpush1.bf16.msra.mxu0 %v415
        %495 = vmatprep.subr.bf16.mxu0 0
        %496 = vmatpush2.bf16.msra.mxu0 0
        %497 = vmatprep.subr.bf16.mxu0 0
        %498 = vmatpush2.bf16.msra.mxu0 0
        %499 = vmatprep.subr.bf16.mxu0 0
        %500 = vmatpush2.bf16.msra.mxu0 0
        %501 = vmatprep.subr.bf16.mxu0 0
        %502 = vmatpush2.bf16.msra.mxu0 0
        %503 = vmatprep.subr.bf16.mxu0 0
        %504 = vmatpush2.bf16.msra.mxu0 0
        %505 = vmatprep.subr.bf16.mxu0 0
        %506 = vmatpush2.bf16.msra.mxu0 0
        %507 = vmatprep.subr.bf16.mxu0 0
        %508 = vmatpush2.bf16.msra.mxu0 0
        %509 = vmatprep.subr.bf16.mxu0 0
        %510 = vmatpush2.bf16.msra.mxu0 0
        %511 = vmatprep.mubr.bf16.mxu0 0
        %512 = vmatmul.mubr.bf16.gmra.mxu0 %v297
        %v513 = vpop.f32.mrf.mxu0
        %v514 = vadd.f32 %v302, %v513
        %v515 = vpop.f32.mrf.mxu0
        %v516 = vadd.f32 %v306, %v515
        %v517 = vpop.f32.mrf.mxu0
        %v518 = vadd.f32 %v302, %v517
        %v519 = vpop.f32.mrf.mxu0
        %v520 = vadd.f32 %v306, %v519
        %521 = vdwg.mxu0
        %522 = vmatprep.subr.bf16.mxu0 %v446
        %523 = vmatpush1.bf16.msra.mxu0 %v445
        %524 = vmatprep.subr.bf16.mxu0 %v442
        %525 = vmatpush1.bf16.msra.mxu0 %v441
        %526 = vmatprep.subr.bf16.mxu0 %v438
        %527 = vmatpush1.bf16.msra.mxu0 %v437
        %528 = vmatprep.subr.bf16.mxu0 %v434
        %529 = vmatpush1.bf16.msra.mxu0 %v433
        %530 = vmatprep.subr.bf16.mxu0 %v430
        %531 = vmatpush1.bf16.msra.mxu0 %v429
        %532 = vmatprep.subr.bf16.mxu0 %v426
        %533 = vmatpush1.bf16.msra.mxu0 %v425
        %534 = vmatprep.subr.bf16.mxu0 %v422
        %535 = vmatpush1.bf16.msra.mxu0 %v421
        %536 = vmatprep.subr.bf16.mxu0 %v418
        %537 = vmatpush1.bf16.msra.mxu0 %v417
        %538 = vmatprep.subr.bf16.mxu0 0
        %539 = vmatpush2.bf16.msra.mxu0 0
        %540 = vmatprep.subr.bf16.mxu0 0
        %541 = vmatpush2.bf16.msra.mxu0 0
        %542 = vmatprep.subr.bf16.mxu0 0
        %543 = vmatpush2.bf16.msra.mxu0 0
        %544 = vmatprep.subr.bf16.mxu0 0
        %545 = vmatpush2.bf16.msra.mxu0 0
        %546 = vmatprep.subr.bf16.mxu0 0
        %547 = vmatpush2.bf16.msra.mxu0 0
        %548 = vmatprep.subr.bf16.mxu0 0
        %549 = vmatpush2.bf16.msra.mxu0 0
        %550 = vmatprep.subr.bf16.mxu0 0
        %551 = vmatpush2.bf16.msra.mxu0 0
        %552 = vmatprep.subr.bf16.mxu0 0
        %553 = vmatpush2.bf16.msra.mxu0 0
        %554 = vmatprep.mubr.bf16.mxu0 0
        %555 = vmatmul.mubr.bf16.gmra.mxu0 %v297
        %v556 = vpop.f32.mrf.mxu0
        %v557 = vadd.f32 %v310, %v556
        %v558 = vpop.f32.mrf.mxu0
        %v559 = vadd.f32 %v314, %v558
        %v560 = vpop.f32.mrf.mxu0
        %v561 = vadd.f32 %v310, %v560
        %v562 = vpop.f32.mrf.mxu0
        %v563 = vadd.f32 %v314, %v562
        %564 = vdwg.mxu0
        %v566 = vcombine.high %v514, %v514
        %v568 = vunpack.c.l.s4 1966171168
        %v569 = vunpack.c.0.s8 %v568
        %v570 = vlaneseq
        %v571 = vshrl.u32 %v570, 7
        %v572 = vsub.s32 %v569, %v571
        %v573 = vrot.slane %v514, %v572
        %v575 = vunpack.c.l.s4 1966171168
        %v576 = vunpack.c.0.s8 %v575
        %v577 = vlaneseq
        %v578 = vshrl.u32 %v577, 7
        %v579 = vsub.s32 %v576, %v578
        %v580 = vrot.slane %v566, %v579
        %v581 = vcombine.high %v573, %v573
        %v582 = vcombine.high %v580, %v580
        %v584 = vunpack.c.l.s4 1966171168
        %v585 = vunpack.c.0.s8 %v584
        %v586 = vlaneseq
        %v587 = vshrl.u32 %v586, 7
        %v588 = vsub.s32 %v585, %v587
        %v589 = vrot.slane %v573, %v588
        %v591 = vunpack.c.l.s4 1966171168
        %v592 = vunpack.c.0.s8 %v591
        %v593 = vlaneseq
        %v594 = vshrl.u32 %v593, 7
        %v595 = vsub.s32 %v592, %v594
        %v596 = vrot.slane %v580, %v595
        %v598 = vunpack.c.l.s4 1966171168
        %v599 = vunpack.c.0.s8 %v598
        %v600 = vlaneseq
        %v601 = vshrl.u32 %v600, 7
        %v602 = vsub.s32 %v599, %v601
        %v603 = vrot.slane %v581, %v602
        %v605 = vunpack.c.l.s4 1966171168
        %v606 = vunpack.c.0.s8 %v605
        %v607 = vlaneseq
        %v608 = vshrl.u32 %v607, 7
        %v609 = vsub.s32 %v606, %v608
        %v610 = vrot.slane %v582, %v609
        %v611 = vcombine.high %v589, %v589
        %v612 = vcombine.high %v596, %v596
        %v613 = vcombine.high %v603, %v603
        %v614 = vcombine.high %v610, %v610
        %623 = vst [vmem:[#allocation3] sm:$0x1] %v589
        %624 = vst [vmem:[#allocation3 + $0x8] sm:$0x1] %v603
        %625 = vst [vmem:[#allocation3 + $0x10] sm:$0x1] %v611
        %626 = vst [vmem:[#allocation3 + $0x18] sm:$0x1] %v613
        %627 = vst [vmem:[#allocation3 + $0x20] sm:$0x1] %v596
        %628 = vst [vmem:[#allocation3 + $0x28] sm:$0x1] %v610
        %629 = vst [vmem:[#allocation3 + $0x30] sm:$0x1] %v612
        %630 = vst [vmem:[#allocation3 + $0x38] sm:$0x1] %v614
        %v632 = vcombine.high %v518, %v518
        %v634 = vunpack.c.l.s4 1966171168
        %v635 = vunpack.c.0.s8 %v634
        %v636 = vlaneseq
        %v637 = vshrl.u32 %v636, 7
        %v638 = vsub.s32 %v635, %v637
        %v639 = vrot.slane %v518, %v638
        %v641 = vunpack.c.l.s4 1966171168
        %v642 = vunpack.c.0.s8 %v641
        %v643 = vlaneseq
        %v644 = vshrl.u32 %v643, 7
        %v645 = vsub.s32 %v642, %v644
        %v646 = vrot.slane %v632, %v645
        %v647 = vcombine.high %v639, %v639
        %v648 = vcombine.high %v646, %v646
        %v650 = vunpack.c.l.s4 1966171168
        %v651 = vunpack.c.0.s8 %v650
        %v652 = vlaneseq
        %v653 = vshrl.u32 %v652, 7
        %v654 = vsub.s32 %v651, %v653
        %v655 = vrot.slane %v639, %v654
        %v657 = vunpack.c.l.s4 1966171168
        %v658 = vunpack.c.0.s8 %v657
        %v659 = vlaneseq
        %v660 = vshrl.u32 %v659, 7
        %v661 = vsub.s32 %v658, %v660
        %v662 = vrot.slane %v646, %v661
        %v664 = vunpack.c.l.s4 1966171168
        %v665 = vunpack.c.0.s8 %v664
        %v666 = vlaneseq
        %v667 = vshrl.u32 %v666, 7
        %v668 = vsub.s32 %v665, %v667
        %v669 = vrot.slane %v647, %v668
        %v671 = vunpack.c.l.s4 1966171168
        %v672 = vunpack.c.0.s8 %v671
        %v673 = vlaneseq
        %v674 = vshrl.u32 %v673, 7
        %v675 = vsub.s32 %v672, %v674
        %v676 = vrot.slane %v648, %v675
        %v677 = vcombine.high %v655, %v655
        %v678 = vcombine.high %v662, %v662
        %v679 = vcombine.high %v669, %v669
        %v680 = vcombine.high %v676, %v676
        %689 = vst [vmem:[#allocation3 + $0x1] sm:$0x1] %v655
        %690 = vst [vmem:[#allocation3 + $0x9] sm:$0x1] %v669
        %691 = vst [vmem:[#allocation3 + $0x11] sm:$0x1] %v677
        %692 = vst [vmem:[#allocation3 + $0x19] sm:$0x1] %v679
        %693 = vst [vmem:[#allocation3 + $0x21] sm:$0x1] %v662
        %694 = vst [vmem:[#allocation3 + $0x29] sm:$0x1] %v676
        %695 = vst [vmem:[#allocation3 + $0x31] sm:$0x1] %v678
        %696 = vst [vmem:[#allocation3 + $0x39] sm:$0x1] %v680
        %v698 = vcombine.high %v516, %v516
        %v700 = vunpack.c.l.s4 1966171168
        %v701 = vunpack.c.0.s8 %v700
        %v702 = vlaneseq
        %v703 = vshrl.u32 %v702, 7
        %v704 = vsub.s32 %v701, %v703
        %v705 = vrot.slane %v516, %v704
        %v707 = vunpack.c.l.s4 1966171168
        %v708 = vunpack.c.0.s8 %v707
        %v709 = vlaneseq
        %v710 = vshrl.u32 %v709, 7
        %v711 = vsub.s32 %v708, %v710
        %v712 = vrot.slane %v698, %v711
        %v713 = vcombine.high %v705, %v705
        %v714 = vcombine.high %v712, %v712
        %v716 = vunpack.c.l.s4 1966171168
        %v717 = vunpack.c.0.s8 %v716
        %v718 = vlaneseq
        %v719 = vshrl.u32 %v718, 7
        %v720 = vsub.s32 %v717, %v719
        %v721 = vrot.slane %v705, %v720
        %v723 = vunpack.c.l.s4 1966171168
        %v724 = vunpack.c.0.s8 %v723
        %v725 = vlaneseq
        %v726 = vshrl.u32 %v725, 7
        %v727 = vsub.s32 %v724, %v726
        %v728 = vrot.slane %v712, %v727
        %v730 = vunpack.c.l.s4 1966171168
        %v731 = vunpack.c.0.s8 %v730
        %v732 = vlaneseq
        %v733 = vshrl.u32 %v732, 7
        %v734 = vsub.s32 %v731, %v733
        %v735 = vrot.slane %v713, %v734
        %v737 = vunpack.c.l.s4 1966171168
        %v738 = vunpack.c.0.s8 %v737
        %v739 = vlaneseq
        %v740 = vshrl.u32 %v739, 7
        %v741 = vsub.s32 %v738, %v740
        %v742 = vrot.slane %v714, %v741
        %v743 = vcombine.high %v721, %v721
        %v744 = vcombine.high %v728, %v728
        %v745 = vcombine.high %v735, %v735
        %v746 = vcombine.high %v742, %v742
        %755 = vst [vmem:[#allocation3 + $0x2] sm:$0x1] %v721
        %756 = vst [vmem:[#allocation3 + $0xa] sm:$0x1] %v735
        %757 = vst [vmem:[#allocation3 + $0x12] sm:$0x1] %v743
        %758 = vst [vmem:[#allocation3 + $0x1a] sm:$0x1] %v745
        %759 = vst [vmem:[#allocation3 + $0x22] sm:$0x1] %v728
        %760 = vst [vmem:[#allocation3 + $0x2a] sm:$0x1] %v742
        %761 = vst [vmem:[#allocation3 + $0x32] sm:$0x1] %v744
        %762 = vst [vmem:[#allocation3 + $0x3a] sm:$0x1] %v746
        %v764 = vcombine.high %v520, %v520
        %v766 = vunpack.c.l.s4 1966171168
        %v767 = vunpack.c.0.s8 %v766
        %v768 = vlaneseq
        %v769 = vshrl.u32 %v768, 7
        %v770 = vsub.s32 %v767, %v769
        %v771 = vrot.slane %v520, %v770
        %v773 = vunpack.c.l.s4 1966171168
        %v774 = vunpack.c.0.s8 %v773
        %v775 = vlaneseq
        %v776 = vshrl.u32 %v775, 7
        %v777 = vsub.s32 %v774, %v776
        %v778 = vrot.slane %v764, %v777
        %v779 = vcombine.high %v771, %v771
        %v780 = vcombine.high %v778, %v778
        %v782 = vunpack.c.l.s4 1966171168
        %v783 = vunpack.c.0.s8 %v782
        %v784 = vlaneseq
        %v785 = vshrl.u32 %v784, 7
        %v786 = vsub.s32 %v783, %v785
        %v787 = vrot.slane %v771, %v786
        %v789 = vunpack.c.l.s4 1966171168
        %v790 = vunpack.c.0.s8 %v789
        %v791 = vlaneseq
        %v792 = vshrl.u32 %v791, 7
        %v793 = vsub.s32 %v790, %v792
        %v794 = vrot.slane %v778, %v793
        %v796 = vunpack.c.l.s4 1966171168
        %v797 = vunpack.c.0.s8 %v796
        %v798 = vlaneseq
        %v799 = vshrl.u32 %v798, 7
        %v800 = vsub.s32 %v797, %v799
        %v801 = vrot.slane %v779, %v800
        %v803 = vunpack.c.l.s4 1966171168
        %v804 = vunpack.c.0.s8 %v803
        %v805 = vlaneseq
        %v806 = vshrl.u32 %v805, 7
        %v807 = vsub.s32 %v804, %v806
        %v808 = vrot.slane %v780, %v807
        %v809 = vcombine.high %v787, %v787
        %v810 = vcombine.high %v794, %v794
        %v811 = vcombine.high %v801, %v801
        %v812 = vcombine.high %v808, %v808
        %821 = vst [vmem:[#allocation3 + $0x3] sm:$0x1] %v787
        %822 = vst [vmem:[#allocation3 + $0xb] sm:$0x1] %v801
        %823 = vst [vmem:[#allocation3 + $0x13] sm:$0x1] %v809
        %824 = vst [vmem:[#allocation3 + $0x1b] sm:$0x1] %v811
        %825 = vst [vmem:[#allocation3 + $0x23] sm:$0x1] %v794
        %826 = vst [vmem:[#allocation3 + $0x2b] sm:$0x1] %v808
        %827 = vst [vmem:[#allocation3 + $0x33] sm:$0x1] %v810
        %828 = vst [vmem:[#allocation3 + $0x3b] sm:$0x1] %v812
        %v830 = vcombine.high %v557, %v557
        %v832 = vunpack.c.l.s4 1966171168
        %v833 = vunpack.c.0.s8 %v832
        %v834 = vlaneseq
        %v835 = vshrl.u32 %v834, 7
        %v836 = vsub.s32 %v833, %v835
        %v837 = vrot.slane %v557, %v836
        %v839 = vunpack.c.l.s4 1966171168
        %v840 = vunpack.c.0.s8 %v839
        %v841 = vlaneseq
        %v842 = vshrl.u32 %v841, 7
        %v843 = vsub.s32 %v840, %v842
        %v844 = vrot.slane %v830, %v843
        %v845 = vcombine.high %v837, %v837
        %v846 = vcombine.high %v844, %v844
        %v848 = vunpack.c.l.s4 1966171168
        %v849 = vunpack.c.0.s8 %v848
        %v850 = vlaneseq
        %v851 = vshrl.u32 %v850, 7
        %v852 = vsub.s32 %v849, %v851
        %v853 = vrot.slane %v837, %v852
        %v855 = vunpack.c.l.s4 1966171168
        %v856 = vunpack.c.0.s8 %v855
        %v857 = vlaneseq
        %v858 = vshrl.u32 %v857, 7
        %v859 = vsub.s32 %v856, %v858
        %v860 = vrot.slane %v844, %v859
        %v862 = vunpack.c.l.s4 1966171168
        %v863 = vunpack.c.0.s8 %v862
        %v864 = vlaneseq
        %v865 = vshrl.u32 %v864, 7
        %v866 = vsub.s32 %v863, %v865
        %v867 = vrot.slane %v845, %v866
        %v869 = vunpack.c.l.s4 1966171168
        %v870 = vunpack.c.0.s8 %v869
        %v871 = vlaneseq
        %v872 = vshrl.u32 %v871, 7
        %v873 = vsub.s32 %v870, %v872
        %v874 = vrot.slane %v846, %v873
        %v875 = vcombine.high %v853, %v853
        %v876 = vcombine.high %v860, %v860
        %v877 = vcombine.high %v867, %v867
        %v878 = vcombine.high %v874, %v874
        %887 = vst [vmem:[#allocation3 + $0x4] sm:$0x1] %v853
        %888 = vst [vmem:[#allocation3 + $0xc] sm:$0x1] %v867
        %889 = vst [vmem:[#allocation3 + $0x14] sm:$0x1] %v875
        %890 = vst [vmem:[#allocation3 + $0x1c] sm:$0x1] %v877
        %891 = vst [vmem:[#allocation3 + $0x24] sm:$0x1] %v860
        %892 = vst [vmem:[#allocation3 + $0x2c] sm:$0x1] %v874
        %893 = vst [vmem:[#allocation3 + $0x34] sm:$0x1] %v876
        %894 = vst [vmem:[#allocation3 + $0x3c] sm:$0x1] %v878
        %v896 = vcombine.high %v561, %v561
        %v898 = vunpack.c.l.s4 1966171168
        %v899 = vunpack.c.0.s8 %v898
        %v900 = vlaneseq
        %v901 = vshrl.u32 %v900, 7
        %v902 = vsub.s32 %v899, %v901
        %v903 = vrot.slane %v561, %v902
        %v905 = vunpack.c.l.s4 1966171168
        %v906 = vunpack.c.0.s8 %v905
        %v907 = vlaneseq
        %v908 = vshrl.u32 %v907, 7
        %v909 = vsub.s32 %v906, %v908
        %v910 = vrot.slane %v896, %v909
        %v911 = vcombine.high %v903, %v903
        %v912 = vcombine.high %v910, %v910
        %v914 = vunpack.c.l.s4 1966171168
        %v915 = vunpack.c.0.s8 %v914
        %v916 = vlaneseq
        %v917 = vshrl.u32 %v916, 7
        %v918 = vsub.s32 %v915, %v917
        %v919 = vrot.slane %v903, %v918
        %v921 = vunpack.c.l.s4 1966171168
        %v922 = vunpack.c.0.s8 %v921
        %v923 = vlaneseq
        %v924 = vshrl.u32 %v923, 7
        %v925 = vsub.s32 %v922, %v924
        %v926 = vrot.slane %v910, %v925
        %v928 = vunpack.c.l.s4 1966171168
        %v929 = vunpack.c.0.s8 %v928
        %v930 = vlaneseq
        %v931 = vshrl.u32 %v930, 7
        %v932 = vsub.s32 %v929, %v931
        %v933 = vrot.slane %v911, %v932
        %v935 = vunpack.c.l.s4 1966171168
        %v936 = vunpack.c.0.s8 %v935
        %v937 = vlaneseq
        %v938 = vshrl.u32 %v937, 7
        %v939 = vsub.s32 %v936, %v938
        %v940 = vrot.slane %v912, %v939
        %v941 = vcombine.high %v919, %v919
        %v942 = vcombine.high %v926, %v926
        %v943 = vcombine.high %v933, %v933
        %v944 = vcombine.high %v940, %v940
        %953 = vst [vmem:[#allocation3 + $0x5] sm:$0x1] %v919
        %954 = vst [vmem:[#allocation3 + $0xd] sm:$0x1] %v933
        %955 = vst [vmem:[#allocation3 + $0x15] sm:$0x1] %v941
        %956 = vst [vmem:[#allocation3 + $0x1d] sm:$0x1] %v943
        %957 = vst [vmem:[#allocation3 + $0x25] sm:$0x1] %v926
        %958 = vst [vmem:[#allocation3 + $0x2d] sm:$0x1] %v940
        %959 = vst [vmem:[#allocation3 + $0x35] sm:$0x1] %v942
        %960 = vst [vmem:[#allocation3 + $0x3d] sm:$0x1] %v944
        %v962 = vcombine.high %v559, %v559
        %v964 = vunpack.c.l.s4 1966171168
        %v965 = vunpack.c.0.s8 %v964
        %v966 = vlaneseq
        %v967 = vshrl.u32 %v966, 7
        %v968 = vsub.s32 %v965, %v967
        %v969 = vrot.slane %v559, %v968
        %v971 = vunpack.c.l.s4 1966171168
        %v972 = vunpack.c.0.s8 %v971
        %v973 = vlaneseq
        %v974 = vshrl.u32 %v973, 7
        %v975 = vsub.s32 %v972, %v974
        %v976 = vrot.slane %v962, %v975
        %v977 = vcombine.high %v969, %v969
        %v978 = vcombine.high %v976, %v976
        %v980 = vunpack.c.l.s4 1966171168
        %v981 = vunpack.c.0.s8 %v980
        %v982 = vlaneseq
        %v983 = vshrl.u32 %v982, 7
        %v984 = vsub.s32 %v981, %v983
        %v985 = vrot.slane %v969, %v984
        %v987 = vunpack.c.l.s4 1966171168
        %v988 = vunpack.c.0.s8 %v987
        %v989 = vlaneseq
        %v990 = vshrl.u32 %v989, 7
        %v991 = vsub.s32 %v988, %v990
        %v992 = vrot.slane %v976, %v991
        %v994 = vunpack.c.l.s4 1966171168
        %v995 = vunpack.c.0.s8 %v994
        %v996 = vlaneseq
        %v997 = vshrl.u32 %v996, 7
        %v998 = vsub.s32 %v995, %v997
        %v999 = vrot.slane %v977, %v998
        %v1001 = vunpack.c.l.s4 1966171168
        %v1002 = vunpack.c.0.s8 %v1001
        %v1003 = vlaneseq
        %v1004 = vshrl.u32 %v1003, 7
        %v1005 = vsub.s32 %v1002, %v1004
        %v1006 = vrot.slane %v978, %v1005
        %v1007 = vcombine.high %v985, %v985
        %v1008 = vcombine.high %v992, %v992
        %v1009 = vcombine.high %v999, %v999
        %v1010 = vcombine.high %v1006, %v1006
        %1019 = vst [vmem:[#allocation3 + $0x6] sm:$0x1] %v985
        %1020 = vst [vmem:[#allocation3 + $0xe] sm:$0x1] %v999
        %1021 = vst [vmem:[#allocation3 + $0x16] sm:$0x1] %v1007
        %1022 = vst [vmem:[#allocation3 + $0x1e] sm:$0x1] %v1009
        %1023 = vst [vmem:[#allocation3 + $0x26] sm:$0x1] %v992
        %1024 = vst [vmem:[#allocation3 + $0x2e] sm:$0x1] %v1006
        %1025 = vst [vmem:[#allocation3 + $0x36] sm:$0x1] %v1008
        %1026 = vst [vmem:[#allocation3 + $0x3e] sm:$0x1] %v1010
        %v1028 = vcombine.high %v563, %v563
        %v1030 = vunpack.c.l.s4 1966171168
        %v1031 = vunpack.c.0.s8 %v1030
        %v1032 = vlaneseq
        %v1033 = vshrl.u32 %v1032, 7
        %v1034 = vsub.s32 %v1031, %v1033
        %v1035 = vrot.slane %v563, %v1034
        %v1037 = vunpack.c.l.s4 1966171168
        %v1038 = vunpack.c.0.s8 %v1037
        %v1039 = vlaneseq
        %v1040 = vshrl.u32 %v1039, 7
        %v1041 = vsub.s32 %v1038, %v1040
        %v1042 = vrot.slane %v1028, %v1041
        %v1043 = vcombine.high %v1035, %v1035
        %v1044 = vcombine.high %v1042, %v1042
        %v1046 = vunpack.c.l.s4 1966171168
        %v1047 = vunpack.c.0.s8 %v1046
        %v1048 = vlaneseq
        %v1049 = vshrl.u32 %v1048, 7
        %v1050 = vsub.s32 %v1047, %v1049
        %v1051 = vrot.slane %v1035, %v1050
        %v1053 = vunpack.c.l.s4 1966171168
        %v1054 = vunpack.c.0.s8 %v1053
        %v1055 = vlaneseq
        %v1056 = vshrl.u32 %v1055, 7
        %v1057 = vsub.s32 %v1054, %v1056
        %v1058 = vrot.slane %v1042, %v1057
        %v1060 = vunpack.c.l.s4 1966171168
        %v1061 = vunpack.c.0.s8 %v1060
        %v1062 = vlaneseq
        %v1063 = vshrl.u32 %v1062, 7
        %v1064 = vsub.s32 %v1061, %v1063
        %v1065 = vrot.slane %v1043, %v1064
        %v1067 = vunpack.c.l.s4 1966171168
        %v1068 = vunpack.c.0.s8 %v1067
        %v1069 = vlaneseq
        %v1070 = vshrl.u32 %v1069, 7
        %v1071 = vsub.s32 %v1068, %v1070
        %v1072 = vrot.slane %v1044, %v1071
        %v1073 = vcombine.high %v1051, %v1051
        %v1074 = vcombine.high %v1058, %v1058
        %v1075 = vcombine.high %v1065, %v1065
        %v1076 = vcombine.high %v1072, %v1072
        %1085 = vst [vmem:[#allocation3 + $0x7] sm:$0x1] %v1051
        %1086 = vst [vmem:[#allocation3 + $0xf] sm:$0x1] %v1065
        %1087 = vst [vmem:[#allocation3 + $0x17] sm:$0x1] %v1073
        %1088 = vst [vmem:[#allocation3 + $0x1f] sm:$0x1] %v1075
        %1089 = vst [vmem:[#allocation3 + $0x27] sm:$0x1] %v1058
        %1090 = vst [vmem:[#allocation3 + $0x2f] sm:$0x1] %v1072
        %1091 = vst [vmem:[#allocation3 + $0x37] sm:$0x1] %v1074
        %1092 = vst [vmem:[#allocation3 + $0x3f] sm:$0x1] %v1076
        %v1093 = vlaneseq
        %v1094 = vshrl.u32 %v1093, 7
        %vm1095 = vcmp.ge.s32.totalorder %v1094, 4
        %vm1096 = vcmp.lt.s32.totalorder %v1094, 6
        %vm1097 = vmand %vm1095, %vm1096
        %v1098 = vsel %vm1097, 1.0, 0.5
        %v1099 = vsel %vm1097, 0.0, 0.5
        %v1100 = vld [vmem:[#allocation3] sm:$0xff]
        %v1101 = vmul.f32 %v1098, %v1100
        %v1102 = vtanh.pop %v1101
        %v1103 = vmul.f32 %v1098, %v1102
        %v1104 = vadd.f32 %v1103, %v1099
        %v1106 = vrot.slane %v1104, 4
        %v1108 = vmul.f32 %v1104, %v1106
        %v1109 = vtanh.pop %v1108
        %v1111 = vrot.slane %v1109, 2
        %v1113 = vmul.f32 %v1104, %v1111
        %v1115 = vcombine.high %v1113, %v1113
        %v1117 = vunpack.c.l.s4 1966171168
        %v1118 = vunpack.c.0.s8 %v1117
        %v1119 = vlaneseq
        %v1120 = vshrl.u32 %v1119, 7
        %v1121 = vsub.s32 %v1118, %v1120
        %v1122 = vrot.slane %v1115, %v1121
        %v1123 = vcombine.high %v1122, %v1122
        %v1125 = vunpack.c.l.s4 1966171168
        %v1126 = vunpack.c.0.s8 %v1125
        %v1127 = vlaneseq
        %v1128 = vshrl.u32 %v1127, 7
        %v1129 = vsub.s32 %v1126, %v1128
        %v1130 = vrot.slane %v1122, %v1129
        %v1132 = vunpack.c.l.s4 1966171168
        %v1133 = vunpack.c.0.s8 %v1132
        %v1134 = vlaneseq
        %v1135 = vshrl.u32 %v1134, 7
        %v1136 = vsub.s32 %v1133, %v1135
        %v1137 = vrot.slane %v1123, %v1136
        %v1138 = vcombine.high %v1130, %v1130
        %v1139 = vcombine.high %v1137, %v1137
        %1142 = vst [vmem:[#allocation2] sm:$0x1] %v1138
        %1143 = vst [vmem:[#allocation2 + $0x8] sm:$0x1] %v1139
        %1144 = vst [vmem:[#allocation5] sm:$0x1] %v1138
        %1145 = vst [vmem:[#allocation5 + $0x8] sm:$0x1] %v1139
        %v1146 = vpack.c.bf16 %v1113, %v1113
        %v1148 = vrot.slane %v1146, 3
        %v1182 = vunpack.c.l.b16 %v264
        %v1183 = vunpack.c.h.b16 %v264
        %v1184 = vunpack.c.l.b16 %v265
        %v1185 = vunpack.c.h.b16 %v265
        %v1186 = vunpack.c.l.b16 %v266
        %v1187 = vunpack.c.h.b16 %v266
        %v1188 = vunpack.c.l.b16 %v267
        %v1189 = vunpack.c.h.b16 %v267
        %v1190 = vunpack.c.l.b16 %v268
        %v1191 = vunpack.c.h.b16 %v268
        %v1192 = vunpack.c.l.b16 %v269
        %v1193 = vunpack.c.h.b16 %v269
        %v1194 = vunpack.c.l.b16 %v270
        %v1195 = vunpack.c.h.b16 %v270
        %v1196 = vunpack.c.l.b16 %v271
        %v1197 = vunpack.c.h.b16 %v271
        %v1198 = vunpack.c.l.b16 %v272
        %v1199 = vunpack.c.h.b16 %v272
        %v1200 = vunpack.c.l.b16 %v273
        %v1201 = vunpack.c.h.b16 %v273
        %v1202 = vunpack.c.l.b16 %v274
        %v1203 = vunpack.c.h.b16 %v274
        %v1204 = vunpack.c.l.b16 %v275
        %v1205 = vunpack.c.h.b16 %v275
        %v1206 = vunpack.c.l.b16 %v276
        %v1207 = vunpack.c.h.b16 %v276
        %v1208 = vunpack.c.l.b16 %v277
        %v1209 = vunpack.c.h.b16 %v277
        %v1210 = vunpack.c.l.b16 %v278
        %v1211 = vunpack.c.h.b16 %v278
        %v1212 = vunpack.c.l.b16 %v279
        %v1213 = vunpack.c.h.b16 %v279
        %v1214 = vunpack.c.l.b16 %v280
        %v1215 = vunpack.c.h.b16 %v280
        %v1216 = vunpack.c.l.b16 %v281
        %v1217 = vunpack.c.h.b16 %v281
        %v1218 = vunpack.c.l.b16 %v282
        %v1219 = vunpack.c.h.b16 %v282
        %v1220 = vunpack.c.l.b16 %v283
        %v1221 = vunpack.c.h.b16 %v283
        %v1222 = vunpack.c.l.b16 %v284
        %v1223 = vunpack.c.h.b16 %v284
        %v1224 = vunpack.c.l.b16 %v285
        %v1225 = vunpack.c.h.b16 %v285
        %v1226 = vunpack.c.l.b16 %v286
        %v1227 = vunpack.c.h.b16 %v286
        %v1228 = vunpack.c.l.b16 %v287
        %v1229 = vunpack.c.h.b16 %v287
        %v1230 = vunpack.c.l.b16 %v288
        %v1231 = vunpack.c.h.b16 %v288
        %v1232 = vunpack.c.l.b16 %v289
        %v1233 = vunpack.c.h.b16 %v289
        %v1234 = vunpack.c.l.b16 %v290
        %v1235 = vunpack.c.h.b16 %v290
        %v1236 = vunpack.c.l.b16 %v291
        %v1237 = vunpack.c.h.b16 %v291
        %v1238 = vunpack.c.l.b16 %v292
        %v1239 = vunpack.c.h.b16 %v292
        %v1240 = vunpack.c.l.b16 %v293
        %v1241 = vunpack.c.h.b16 %v293
        %v1242 = vunpack.c.l.b16 %v294
        %v1243 = vunpack.c.h.b16 %v294
        %v1244 = vunpack.c.l.b16 %v295
        %v1245 = vunpack.c.h.b16 %v295
        %v1246 = vpack.c.b16 %v1186, %v1182
        %v1247 = vpack.c.b16 %v1187, %v1183
        %v1248 = vpack.c.b16 %v1188, %v1184
        %v1249 = vpack.c.b16 %v1189, %v1185
        %v1250 = vpack.c.b16 %v1194, %v1190
        %v1251 = vpack.c.b16 %v1195, %v1191
        %v1252 = vpack.c.b16 %v1196, %v1192
        %v1253 = vpack.c.b16 %v1197, %v1193
        %v1254 = vpack.c.b16 %v1202, %v1198
        %v1255 = vpack.c.b16 %v1203, %v1199
        %v1256 = vpack.c.b16 %v1204, %v1200
        %v1257 = vpack.c.b16 %v1205, %v1201
        %v1258 = vpack.c.b16 %v1210, %v1206
        %v1259 = vpack.c.b16 %v1211, %v1207
        %v1260 = vpack.c.b16 %v1212, %v1208
        %v1261 = vpack.c.b16 %v1213, %v1209
        %v1262 = vpack.c.b16 %v1218, %v1214
        %v1263 = vpack.c.b16 %v1219, %v1215
        %v1264 = vpack.c.b16 %v1220, %v1216
        %v1265 = vpack.c.b16 %v1221, %v1217
        %v1266 = vpack.c.b16 %v1226, %v1222
        %v1267 = vpack.c.b16 %v1227, %v1223
        %v1268 = vpack.c.b16 %v1228, %v1224
        %v1269 = vpack.c.b16 %v1229, %v1225
        %v1270 = vpack.c.b16 %v1234, %v1230
        %v1271 = vpack.c.b16 %v1235, %v1231
        %v1272 = vpack.c.b16 %v1236, %v1232
        %v1273 = vpack.c.b16 %v1237, %v1233
        %v1274 = vpack.c.b16 %v1242, %v1238
        %v1275 = vpack.c.b16 %v1243, %v1239
        %v1276 = vpack.c.b16 %v1244, %v1240
        %v1277 = vpack.c.b16 %v1245, %v1241
        %1310 = vmatprep.subr.bf16.mxu0 %v1275
        %1311 = vmatpush1.bf16.msra.mxu0 %v1274
        %1312 = vmatprep.subr.bf16.mxu0 %v1271
        %1313 = vmatpush1.bf16.msra.mxu0 %v1270
        %1314 = vmatprep.subr.bf16.mxu0 %v1267
        %1315 = vmatpush1.bf16.msra.mxu0 %v1266
        %1316 = vmatprep.subr.bf16.mxu0 %v1263
        %1317 = vmatpush1.bf16.msra.mxu0 %v1262
        %1318 = vmatprep.subr.bf16.mxu0 %v1259
        %1319 = vmatpush1.bf16.msra.mxu0 %v1258
        %1320 = vmatprep.subr.bf16.mxu0 %v1255
        %1321 = vmatpush1.bf16.msra.mxu0 %v1254
        %1322 = vmatprep.subr.bf16.mxu0 %v1251
        %1323 = vmatpush1.bf16.msra.mxu0 %v1250
        %1324 = vmatprep.subr.bf16.mxu0 %v1247
        %1325 = vmatpush1.bf16.msra.mxu0 %v1246
        %1326 = vmatprep.subr.bf16.mxu0 0
        %1327 = vmatpush2.bf16.msra.mxu0 0
        %1328 = vmatprep.subr.bf16.mxu0 0
        %1329 = vmatpush2.bf16.msra.mxu0 0
        %1330 = vmatprep.subr.bf16.mxu0 0
        %1331 = vmatpush2.bf16.msra.mxu0 0
        %1332 = vmatprep.subr.bf16.mxu0 0
        %1333 = vmatpush2.bf16.msra.mxu0 0
        %1334 = vmatprep.subr.bf16.mxu0 0
        %1335 = vmatpush2.bf16.msra.mxu0 0
        %1336 = vmatprep.subr.bf16.mxu0 0
        %1337 = vmatpush2.bf16.msra.mxu0 0
        %1338 = vmatprep.subr.bf16.mxu0 0
        %1339 = vmatpush2.bf16.msra.mxu0 0
        %1340 = vmatprep.subr.bf16.mxu0 0
        %1341 = vmatpush2.bf16.msra.mxu0 0
        %1342 = vmatprep.mubr.bf16.mxu0 0
        %1343 = vmatmul.mubr.bf16.gmra.mxu0 %v1148
        %v1344 = vpop.f32.mrf.mxu0
        %v1345 = vadd.f32 0.0, %v1344
        %v1346 = vpop.f32.mrf.mxu0
        %v1347 = vadd.f32 0.0, %v1346
        %v1348 = vpop.f32.mrf.mxu0
        %v1349 = vpop.f32.mrf.mxu0
        %1350 = vdwg.mxu0
        %1351 = vmatprep.subr.bf16.mxu0 %v1277
        %1352 = vmatpush1.bf16.msra.mxu0 %v1276
        %1353 = vmatprep.subr.bf16.mxu0 %v1273
        %1354 = vmatpush1.bf16.msra.mxu0 %v1272
        %1355 = vmatprep.subr.bf16.mxu0 %v1269
        %1356 = vmatpush1.bf16.msra.mxu0 %v1268
        %1357 = vmatprep.subr.bf16.mxu0 %v1265
        %1358 = vmatpush1.bf16.msra.mxu0 %v1264
        %1359 = vmatprep.subr.bf16.mxu0 %v1261
        %1360 = vmatpush1.bf16.msra.mxu0 %v1260
        %1361 = vmatprep.subr.bf16.mxu0 %v1257
        %1362 = vmatpush1.bf16.msra.mxu0 %v1256
        %1363 = vmatprep.subr.bf16.mxu0 %v1253
        %1364 = vmatpush1.bf16.msra.mxu0 %v1252
        %1365 = vmatprep.subr.bf16.mxu0 %v1249
        %1366 = vmatpush1.bf16.msra.mxu0 %v1248
        %1367 = vmatprep.subr.bf16.mxu0 0
        %1368 = vmatpush2.bf16.msra.mxu0 0
        %1369 = vmatprep.subr.bf16.mxu0 0
        %1370 = vmatpush2.bf16.msra.mxu0 0
        %1371 = vmatprep.subr.bf16.mxu0 0
        %1372 = vmatpush2.bf16.msra.mxu0 0
        %1373 = vmatprep.subr.bf16.mxu0 0
        %1374 = vmatpush2.bf16.msra.mxu0 0
        %1375 = vmatprep.subr.bf16.mxu0 0
        %1376 = vmatpush2.bf16.msra.mxu0 0
        %1377 = vmatprep.subr.bf16.mxu0 0
        %1378 = vmatpush2.bf16.msra.mxu0 0
        %1379 = vmatprep.subr.bf16.mxu0 0
        %1380 = vmatpush2.bf16.msra.mxu0 0
        %1381 = vmatprep.subr.bf16.mxu0 0
        %1382 = vmatpush2.bf16.msra.mxu0 0
        %1383 = vmatprep.mubr.bf16.mxu0 0
        %1384 = vmatmul.mubr.bf16.gmra.mxu0 %v1148
        %v1385 = vpop.f32.mrf.mxu0
        %v1386 = vadd.f32 0.0, %v1385
        %v1387 = vpop.f32.mrf.mxu0
        %v1388 = vadd.f32 0.0, %v1387
        %v1389 = vpop.f32.mrf.mxu0
        %v1390 = vpop.f32.mrf.mxu0
        %1391 = vdwg.mxu0
        %1392 = vst [vmem:[#allocation4] sm:$0x3] %v1345
        %1393 = vst [vmem:[#allocation4 + $0x2] sm:$0x3] %v1347
        %1394 = vst [vmem:[#allocation4 + $0x4] sm:$0x3] %v1386
        %1395 = vst [vmem:[#allocation4 + $0x6] sm:$0x3] %v1388
        %s1396 = scalar_lea.vmem [#allocation3], 8
        %v1397 = vld [vmem:[%s1396] sm:$0xff]
        %v1398 = vld [vmem:[#allocation4] sm:$0xff]
        %v1399 = vadd.f32 %v1397, %v1398
        %v1400 = vmul.f32 %v1098, %v1399
        %v1401 = vtanh.pop %v1400
        %v1402 = vmul.f32 %v1098, %v1401
        %v1403 = vadd.f32 %v1402, %v1099
        %v1405 = vrot.slane %v1108, 6
        %v1407 = vmul.f32 %v1403, %v1405
        %v1409 = vrot.slane %v1403, 4
        %v1411 = vmul.f32 %v1403, %v1409
        %v1413 = vrot.slane %v1411, 6
        %v1415 = vadd.f32 %v1407, %v1413
        %v1416 = vtanh.pop %v1415
        %v1418 = vrot.slane %v1416, 4
        %v1420 = vmul.f32 %v1403, %v1418
        %v1422 = vcombine.high %v1420, %v1420
        %v1424 = vunpack.c.l.s4 1966171168
        %v1425 = vunpack.c.0.s8 %v1424
        %v1426 = vlaneseq
        %v1427 = vshrl.u32 %v1426, 7
        %v1428 = vsub.s32 %v1425, %v1427
        %v1429 = vrot.slane %v1422, %v1428
        %v1430 = vcombine.high %v1429, %v1429
        %v1432 = vunpack.c.l.s4 1966171168
        %v1433 = vunpack.c.0.s8 %v1432
        %v1434 = vlaneseq
        %v1435 = vshrl.u32 %v1434, 7
        %v1436 = vsub.s32 %v1433, %v1435
        %v1437 = vrot.slane %v1429, %v1436
        %v1439 = vunpack.c.l.s4 1966171168
        %v1440 = vunpack.c.0.s8 %v1439
        %v1441 = vlaneseq
        %v1442 = vshrl.u32 %v1441, 7
        %v1443 = vsub.s32 %v1440, %v1442
        %v1444 = vrot.slane %v1430, %v1443
        %v1445 = vcombine.high %v1437, %v1437
        %v1446 = vcombine.high %v1444, %v1444
        %1449 = vst [vmem:[#allocation2 + $0x1] sm:$0x1] %v1445
        %1450 = vst [vmem:[#allocation2 + $0x9] sm:$0x1] %v1446
        %1451 = vst [vmem:[#allocation5 + $0x1] sm:$0x1] %v1445
        %1452 = vst [vmem:[#allocation5 + $0x9] sm:$0x1] %v1446
        %v1453 = vpack.c.bf16 %v1420, %v1420
        %v1455 = vrot.slane %v1453, 3
        %1457 = vmatprep.subr.bf16.mxu0 %v1275
        %1458 = vmatpush1.bf16.msra.mxu0 %v1274
        %1459 = vmatprep.subr.bf16.mxu0 %v1271
        %1460 = vmatpush1.bf16.msra.mxu0 %v1270
        %1461 = vmatprep.subr.bf16.mxu0 %v1267
        %1462 = vmatpush1.bf16.msra.mxu0 %v1266
        %1463 = vmatprep.subr.bf16.mxu0 %v1263
        %1464 = vmatpush1.bf16.msra.mxu0 %v1262
        %1465 = vmatprep.subr.bf16.mxu0 %v1259
        %1466 = vmatpush1.bf16.msra.mxu0 %v1258
        %1467 = vmatprep.subr.bf16.mxu0 %v1255
        %1468 = vmatpush1.bf16.msra.mxu0 %v1254
        %1469 = vmatprep.subr.bf16.mxu0 %v1251
        %1470 = vmatpush1.bf16.msra.mxu0 %v1250
        %1471 = vmatprep.subr.bf16.mxu0 %v1247
        %1472 = vmatpush1.bf16.msra.mxu0 %v1246
        %1473 = vmatprep.subr.bf16.mxu0 0
        %1474 = vmatpush2.bf16.msra.mxu0 0
        %1475 = vmatprep.subr.bf16.mxu0 0
        %1476 = vmatpush2.bf16.msra.mxu0 0
        %1477 = vmatprep.subr.bf16.mxu0 0
        %1478 = vmatpush2.bf16.msra.mxu0 0
        %1479 = vmatprep.subr.bf16.mxu0 0
        %1480 = vmatpush2.bf16.msra.mxu0 0
        %1481 = vmatprep.subr.bf16.mxu0 0
        %1482 = vmatpush2.bf16.msra.mxu0 0
        %1483 = vmatprep.subr.bf16.mxu0 0
        %1484 = vmatpush2.bf16.msra.mxu0 0
        %1485 = vmatprep.subr.bf16.mxu0 0
        %1486 = vmatpush2.bf16.msra.mxu0 0
        %1487 = vmatprep.subr.bf16.mxu0 0
        %1488 = vmatpush2.bf16.msra.mxu0 0
        %1489 = vmatprep.mubr.bf16.mxu0 0
        %1490 = vmatmul.mubr.bf16.gmra.mxu0 %v1455
        %v1491 = vpop.f32.mrf.mxu0
        %v1492 = vadd.f32 0.0, %v1491
        %v1493 = vpop.f32.mrf.mxu0
        %v1494 = vadd.f32 0.0, %v1493
        %v1495 = vpop.f32.mrf.mxu0
        %v1496 = vpop.f32.mrf.mxu0
        %1497 = vdwg.mxu0
        %1498 = vmatprep.subr.bf16.mxu0 %v1277
        %1499 = vmatpush1.bf16.msra.mxu0 %v1276
        %1500 = vmatprep.subr.bf16.mxu0 %v1273
        %1501 = vmatpush1.bf16.msra.mxu0 %v1272
        %1502 = vmatprep.subr.bf16.mxu0 %v1269
        %1503 = vmatpush1.bf16.msra.mxu0 %v1268
        %1504 = vmatprep.subr.bf16.mxu0 %v1265
        %1505 = vmatpush1.bf16.msra.mxu0 %v1264
        %1506 = vmatprep.subr.bf16.mxu0 %v1261
        %1507 = vmatpush1.bf16.msra.mxu0 %v1260
        %1508 = vmatprep.subr.bf16.mxu0 %v1257
        %1509 = vmatpush1.bf16.msra.mxu0 %v1256
        %1510 = vmatprep.subr.bf16.mxu0 %v1253
        %1511 = vmatpush1.bf16.msra.mxu0 %v1252
        %1512 = vmatprep.subr.bf16.mxu0 %v1249
        %1513 = vmatpush1.bf16.msra.mxu0 %v1248
        %1514 = vmatprep.subr.bf16.mxu0 0
        %1515 = vmatpush2.bf16.msra.mxu0 0
        %1516 = vmatprep.subr.bf16.mxu0 0
        %1517 = vmatpush2.bf16.msra.mxu0 0
        %1518 = vmatprep.subr.bf16.mxu0 0
        %1519 = vmatpush2.bf16.msra.mxu0 0
        %1520 = vmatprep.subr.bf16.mxu0 0
        %1521 = vmatpush2.bf16.msra.mxu0 0
        %1522 = vmatprep.subr.bf16.mxu0 0
        %1523 = vmatpush2.bf16.msra.mxu0 0
        %1524 = vmatprep.subr.bf16.mxu0 0
        %1525 = vmatpush2.bf16.msra.mxu0 0
        %1526 = vmatprep.subr.bf16.mxu0 0
        %1527 = vmatpush2.bf16.msra.mxu0 0
        %1528 = vmatprep.subr.bf16.mxu0 0
        %1529 = vmatpush2.bf16.msra.mxu0 0
        %1530 = vmatprep.mubr.bf16.mxu0 0
        %1531 = vmatmul.mubr.bf16.gmra.mxu0 %v1455
        %v1532 = vpop.f32.mrf.mxu0
        %v1533 = vadd.f32 0.0, %v1532
        %v1534 = vpop.f32.mrf.mxu0
        %v1535 = vadd.f32 0.0, %v1534
        %v1536 = vpop.f32.mrf.mxu0
        %v1537 = vpop.f32.mrf.mxu0
        %1538 = vdwg.mxu0
        %1539 = vst [vmem:[#allocation4] sm:$0x3] %v1492
        %1540 = vst [vmem:[#allocation4 + $0x2] sm:$0x3] %v1494
        %1541 = vst [vmem:[#allocation4 + $0x4] sm:$0x3] %v1533
        %1542 = vst [vmem:[#allocation4 + $0x6] sm:$0x3] %v1535
        %s1543 = scalar_lea.vmem [#allocation3], 16
        %v1544 = vld [vmem:[%s1543] sm:$0xff]
        %v1545 = vld [vmem:[#allocation4] sm:$0xff]
        %v1546 = vadd.f32 %v1544, %v1545
        %v1547 = vmul.f32 %v1098, %v1546
        %v1548 = vtanh.pop %v1547
        %v1549 = vmul.f32 %v1098, %v1548
        %v1550 = vadd.f32 %v1549, %v1099
        %v1551 = vmul.f32 %v1550, %v1415
        %v1553 = vrot.slane %v1550, 4
        %v1555 = vmul.f32 %v1550, %v1553
        %v1557 = vrot.slane %v1555, 6
        %v1559 = vadd.f32 %v1551, %v1557
        %v1560 = vtanh.pop %v1559
        %v1562 = vrot.slane %v1560, 4
        %v1564 = vmul.f32 %v1550, %v1562
        %v1566 = vcombine.high %v1564, %v1564
        %v1568 = vunpack.c.l.s4 1966171168
        %v1569 = vunpack.c.0.s8 %v1568
        %v1570 = vlaneseq
        %v1571 = vshrl.u32 %v1570, 7
        %v1572 = vsub.s32 %v1569, %v1571
        %v1573 = vrot.slane %v1566, %v1572
        %v1574 = vcombine.high %v1573, %v1573
        %v1576 = vunpack.c.l.s4 1966171168
        %v1577 = vunpack.c.0.s8 %v1576
        %v1578 = vlaneseq
        %v1579 = vshrl.u32 %v1578, 7
        %v1580 = vsub.s32 %v1577, %v1579
        %v1581 = vrot.slane %v1573, %v1580
        %v1583 = vunpack.c.l.s4 1966171168
        %v1584 = vunpack.c.0.s8 %v1583
        %v1585 = vlaneseq
        %v1586 = vshrl.u32 %v1585, 7
        %v1587 = vsub.s32 %v1584, %v1586
        %v1588 = vrot.slane %v1574, %v1587
        %v1589 = vcombine.high %v1581, %v1581
        %v1590 = vcombine.high %v1588, %v1588
        %1593 = vst [vmem:[#allocation2 + $0x2] sm:$0x1] %v1589
        %1594 = vst [vmem:[#allocation2 + $0xa] sm:$0x1] %v1590
        %1595 = vst [vmem:[#allocation5 + $0x2] sm:$0x1] %v1589
        %1596 = vst [vmem:[#allocation5 + $0xa] sm:$0x1] %v1590
        %v1597 = vpack.c.bf16 %v1564, %v1564
        %v1599 = vrot.slane %v1597, 3
        %1601 = vmatprep.subr.bf16.mxu0 %v1275
        %1602 = vmatpush1.bf16.msra.mxu0 %v1274
        %1603 = vmatprep.subr.bf16.mxu0 %v1271
        %1604 = vmatpush1.bf16.msra.mxu0 %v1270
        %1605 = vmatprep.subr.bf16.mxu0 %v1267
        %1606 = vmatpush1.bf16.msra.mxu0 %v1266
        %1607 = vmatprep.subr.bf16.mxu0 %v1263
        %1608 = vmatpush1.bf16.msra.mxu0 %v1262
        %1609 = vmatprep.subr.bf16.mxu0 %v1259
        %1610 = vmatpush1.bf16.msra.mxu0 %v1258
        %1611 = vmatprep.subr.bf16.mxu0 %v1255
        %1612 = vmatpush1.bf16.msra.mxu0 %v1254
        %1613 = vmatprep.subr.bf16.mxu0 %v1251
        %1614 = vmatpush1.bf16.msra.mxu0 %v1250
        %1615 = vmatprep.subr.bf16.mxu0 %v1247
        %1616 = vmatpush1.bf16.msra.mxu0 %v1246
        %1617 = vmatprep.subr.bf16.mxu0 0
        %1618 = vmatpush2.bf16.msra.mxu0 0
        %1619 = vmatprep.subr.bf16.mxu0 0
        %1620 = vmatpush2.bf16.msra.mxu0 0
        %1621 = vmatprep.subr.bf16.mxu0 0
        %1622 = vmatpush2.bf16.msra.mxu0 0
        %1623 = vmatprep.subr.bf16.mxu0 0
        %1624 = vmatpush2.bf16.msra.mxu0 0
        %1625 = vmatprep.subr.bf16.mxu0 0
        %1626 = vmatpush2.bf16.msra.mxu0 0
        %1627 = vmatprep.subr.bf16.mxu0 0
        %1628 = vmatpush2.bf16.msra.mxu0 0
        %1629 = vmatprep.subr.bf16.mxu0 0
        %1630 = vmatpush2.bf16.msra.mxu0 0
        %1631 = vmatprep.subr.bf16.mxu0 0
        %1632 = vmatpush2.bf16.msra.mxu0 0
        %1633 = vmatprep.mubr.bf16.mxu0 0
        %1634 = vmatmul.mubr.bf16.gmra.mxu0 %v1599
        %v1635 = vpop.f32.mrf.mxu0
        %v1636 = vadd.f32 0.0, %v1635
        %v1637 = vpop.f32.mrf.mxu0
        %v1638 = vadd.f32 0.0, %v1637
        %v1639 = vpop.f32.mrf.mxu0
        %v1640 = vpop.f32.mrf.mxu0
        %1641 = vdwg.mxu0
        %1642 = vmatprep.subr.bf16.mxu0 %v1277
        %1643 = vmatpush1.bf16.msra.mxu0 %v1276
        %1644 = vmatprep.subr.bf16.mxu0 %v1273
        %1645 = vmatpush1.bf16.msra.mxu0 %v1272
        %1646 = vmatprep.subr.bf16.mxu0 %v1269
        %1647 = vmatpush1.bf16.msra.mxu0 %v1268
        %1648 = vmatprep.subr.bf16.mxu0 %v1265
        %1649 = vmatpush1.bf16.msra.mxu0 %v1264
        %1650 = vmatprep.subr.bf16.mxu0 %v1261
        %1651 = vmatpush1.bf16.msra.mxu0 %v1260
        %1652 = vmatprep.subr.bf16.mxu0 %v1257
        %1653 = vmatpush1.bf16.msra.mxu0 %v1256
        %1654 = vmatprep.subr.bf16.mxu0 %v1253
        %1655 = vmatpush1.bf16.msra.mxu0 %v1252
        %1656 = vmatprep.subr.bf16.mxu0 %v1249
        %1657 = vmatpush1.bf16.msra.mxu0 %v1248
        %1658 = vmatprep.subr.bf16.mxu0 0
        %1659 = vmatpush2.bf16.msra.mxu0 0
        %1660 = vmatprep.subr.bf16.mxu0 0
        %1661 = vmatpush2.bf16.msra.mxu0 0
        %1662 = vmatprep.subr.bf16.mxu0 0
        %1663 = vmatpush2.bf16.msra.mxu0 0
        %1664 = vmatprep.subr.bf16.mxu0 0
        %1665 = vmatpush2.bf16.msra.mxu0 0
        %1666 = vmatprep.subr.bf16.mxu0 0
        %1667 = vmatpush2.bf16.msra.mxu0 0
        %1668 = vmatprep.subr.bf16.mxu0 0
        %1669 = vmatpush2.bf16.msra.mxu0 0
        %1670 = vmatprep.subr.bf16.mxu0 0
        %1671 = vmatpush2.bf16.msra.mxu0 0
        %1672 = vmatprep.subr.bf16.mxu0 0
        %1673 = vmatpush2.bf16.msra.mxu0 0
        %1674 = vmatprep.mubr.bf16.mxu0 0
        %1675 = vmatmul.mubr.bf16.gmra.mxu0 %v1599
        %v1676 = vpop.f32.mrf.mxu0
        %v1677 = vadd.f32 0.0, %v1676
        %v1678 = vpop.f32.mrf.mxu0
        %v1679 = vadd.f32 0.0, %v1678
        %v1680 = vpop.f32.mrf.mxu0
        %v1681 = vpop.f32.mrf.mxu0
        %1682 = vdwg.mxu0
        %1683 = vst [vmem:[#allocation4] sm:$0x3] %v1636
        %1684 = vst [vmem:[#allocation4 + $0x2] sm:$0x3] %v1638
        %1685 = vst [vmem:[#allocation4 + $0x4] sm:$0x3] %v1677
        %1686 = vst [vmem:[#allocation4 + $0x6] sm:$0x3] %v1679
        %s1687 = scalar_lea.vmem [#allocation3], 24
        %v1688 = vld [vmem:[%s1687] sm:$0xff]
        %v1689 = vld [vmem:[#allocation4] sm:$0xff]
        %v1690 = vadd.f32 %v1688, %v1689
        %v1691 = vmul.f32 %v1098, %v1690
        %v1692 = vtanh.pop %v1691
        %v1693 = vmul.f32 %v1098, %v1692
        %v1694 = vadd.f32 %v1693, %v1099
        %v1695 = vmul.f32 %v1694, %v1559
        %v1697 = vrot.slane %v1694, 4
        %v1699 = vmul.f32 %v1694, %v1697
        %v1701 = vrot.slane %v1699, 6
        %v1703 = vadd.f32 %v1695, %v1701
        %v1704 = vtanh.pop %v1703
        %v1706 = vrot.slane %v1704, 4
        %v1708 = vmul.f32 %v1694, %v1706
        %v1710 = vcombine.high %v1708, %v1708
        %v1712 = vunpack.c.l.s4 1966171168
        %v1713 = vunpack.c.0.s8 %v1712
        %v1714 = vlaneseq
        %v1715 = vshrl.u32 %v1714, 7
        %v1716 = vsub.s32 %v1713, %v1715
        %v1717 = vrot.slane %v1710, %v1716
        %v1718 = vcombine.high %v1717, %v1717
        %v1720 = vunpack.c.l.s4 1966171168
        %v1721 = vunpack.c.0.s8 %v1720
        %v1722 = vlaneseq
        %v1723 = vshrl.u32 %v1722, 7
        %v1724 = vsub.s32 %v1721, %v1723
        %v1725 = vrot.slane %v1717, %v1724
        %v1727 = vunpack.c.l.s4 1966171168
        %v1728 = vunpack.c.0.s8 %v1727
        %v1729 = vlaneseq
        %v1730 = vshrl.u32 %v1729, 7
        %v1731 = vsub.s32 %v1728, %v1730
        %v1732 = vrot.slane %v1718, %v1731
        %v1733 = vcombine.high %v1725, %v1725
        %v1734 = vcombine.high %v1732, %v1732
        %1737 = vst [vmem:[#allocation2 + $0x3] sm:$0x1] %v1733
        %1738 = vst [vmem:[#allocation2 + $0xb] sm:$0x1] %v1734
        %1739 = vst [vmem:[#allocation5 + $0x3] sm:$0x1] %v1733
        %1740 = vst [vmem:[#allocation5 + $0xb] sm:$0x1] %v1734
        %v1741 = vpack.c.bf16 %v1708, %v1708
        %v1743 = vrot.slane %v1741, 3
        %1745 = vmatprep.subr.bf16.mxu0 %v1275
        %1746 = vmatpush1.bf16.msra.mxu0 %v1274
        %1747 = vmatprep.subr.bf16.mxu0 %v1271
        %1748 = vmatpush1.bf16.msra.mxu0 %v1270
        %1749 = vmatprep.subr.bf16.mxu0 %v1267
        %1750 = vmatpush1.bf16.msra.mxu0 %v1266
        %1751 = vmatprep.subr.bf16.mxu0 %v1263
        %1752 = vmatpush1.bf16.msra.mxu0 %v1262
        %1753 = vmatprep.subr.bf16.mxu0 %v1259
        %1754 = vmatpush1.bf16.msra.mxu0 %v1258
        %1755 = vmatprep.subr.bf16.mxu0 %v1255
        %1756 = vmatpush1.bf16.msra.mxu0 %v1254
        %1757 = vmatprep.subr.bf16.mxu0 %v1251
        %1758 = vmatpush1.bf16.msra.mxu0 %v1250
        %1759 = vmatprep.subr.bf16.mxu0 %v1247
        %1760 = vmatpush1.bf16.msra.mxu0 %v1246
        %1761 = vmatprep.subr.bf16.mxu0 0
        %1762 = vmatpush2.bf16.msra.mxu0 0
        %1763 = vmatprep.subr.bf16.mxu0 0
        %1764 = vmatpush2.bf16.msra.mxu0 0
        %1765 = vmatprep.subr.bf16.mxu0 0
        %1766 = vmatpush2.bf16.msra.mxu0 0
        %1767 = vmatprep.subr.bf16.mxu0 0
        %1768 = vmatpush2.bf16.msra.mxu0 0
        %1769 = vmatprep.subr.bf16.mxu0 0
        %1770 = vmatpush2.bf16.msra.mxu0 0
        %1771 = vmatprep.subr.bf16.mxu0 0
        %1772 = vmatpush2.bf16.msra.mxu0 0
        %1773 = vmatprep.subr.bf16.mxu0 0
        %1774 = vmatpush2.bf16.msra.mxu0 0
        %1775 = vmatprep.subr.bf16.mxu0 0
        %1776 = vmatpush2.bf16.msra.mxu0 0
        %1777 = vmatprep.mubr.bf16.mxu0 0
        %1778 = vmatmul.mubr.bf16.gmra.mxu0 %v1743
        %v1779 = vpop.f32.mrf.mxu0
        %v1780 = vadd.f32 0.0, %v1779
        %v1781 = vpop.f32.mrf.mxu0
        %v1782 = vadd.f32 0.0, %v1781
        %v1783 = vpop.f32.mrf.mxu0
        %v1784 = vpop.f32.mrf.mxu0
        %1785 = vdwg.mxu0
        %1786 = vmatprep.subr.bf16.mxu0 %v1277
        %1787 = vmatpush1.bf16.msra.mxu0 %v1276
        %1788 = vmatprep.subr.bf16.mxu0 %v1273
        %1789 = vmatpush1.bf16.msra.mxu0 %v1272
        %1790 = vmatprep.subr.bf16.mxu0 %v1269
        %1791 = vmatpush1.bf16.msra.mxu0 %v1268
        %1792 = vmatprep.subr.bf16.mxu0 %v1265
        %1793 = vmatpush1.bf16.msra.mxu0 %v1264
        %1794 = vmatprep.subr.bf16.mxu0 %v1261
        %1795 = vmatpush1.bf16.msra.mxu0 %v1260
        %1796 = vmatprep.subr.bf16.mxu0 %v1257
        %1797 = vmatpush1.bf16.msra.mxu0 %v1256
        %1798 = vmatprep.subr.bf16.mxu0 %v1253
        %1799 = vmatpush1.bf16.msra.mxu0 %v1252
        %1800 = vmatprep.subr.bf16.mxu0 %v1249
        %1801 = vmatpush1.bf16.msra.mxu0 %v1248
        %1802 = vmatprep.subr.bf16.mxu0 0
        %1803 = vmatpush2.bf16.msra.mxu0 0
        %1804 = vmatprep.subr.bf16.mxu0 0
        %1805 = vmatpush2.bf16.msra.mxu0 0
        %1806 = vmatprep.subr.bf16.mxu0 0
        %1807 = vmatpush2.bf16.msra.mxu0 0
        %1808 = vmatprep.subr.bf16.mxu0 0
        %1809 = vmatpush2.bf16.msra.mxu0 0
        %1810 = vmatprep.subr.bf16.mxu0 0
        %1811 = vmatpush2.bf16.msra.mxu0 0
        %1812 = vmatprep.subr.bf16.mxu0 0
        %1813 = vmatpush2.bf16.msra.mxu0 0
        %1814 = vmatprep.subr.bf16.mxu0 0
        %1815 = vmatpush2.bf16.msra.mxu0 0
        %1816 = vmatprep.subr.bf16.mxu0 0
        %1817 = vmatpush2.bf16.msra.mxu0 0
        %1818 = vmatprep.mubr.bf16.mxu0 0
        %1819 = vmatmul.mubr.bf16.gmra.mxu0 %v1743
        %v1820 = vpop.f32.mrf.mxu0
        %v1821 = vadd.f32 0.0, %v1820
        %v1822 = vpop.f32.mrf.mxu0
        %v1823 = vadd.f32 0.0, %v1822
        %v1824 = vpop.f32.mrf.mxu0
        %v1825 = vpop.f32.mrf.mxu0
        %1826 = vdwg.mxu0
        %1827 = vst [vmem:[#allocation4] sm:$0x3] %v1780
        %1828 = vst [vmem:[#allocation4 + $0x2] sm:$0x3] %v1782
        %1829 = vst [vmem:[#allocation4 + $0x4] sm:$0x3] %v1821
        %1830 = vst [vmem:[#allocation4 + $0x6] sm:$0x3] %v1823
        %s1831 = scalar_lea.vmem [#allocation3], 32
        %v1832 = vld [vmem:[%s1831] sm:$0xff]
        %v1833 = vld [vmem:[#allocation4] sm:$0xff]
        %v1834 = vadd.f32 %v1832, %v1833
        %v1835 = vmul.f32 %v1098, %v1834
        %v1836 = vtanh.pop %v1835
        %v1837 = vmul.f32 %v1098, %v1836
        %v1838 = vadd.f32 %v1837, %v1099
        %v1839 = vmul.f32 %v1838, %v1703
        %v1841 = vrot.slane %v1838, 4
        %v1843 = vmul.f32 %v1838, %v1841
        %v1845 = vrot.slane %v1843, 6
        %v1847 = vadd.f32 %v1839, %v1845
        %v1848 = vtanh.pop %v1847
        %v1850 = vrot.slane %v1848, 4
        %v1852 = vmul.f32 %v1838, %v1850
        %v1854 = vcombine.high %v1852, %v1852
        %v1856 = vunpack.c.l.s4 1966171168
        %v1857 = vunpack.c.0.s8 %v1856
        %v1858 = vlaneseq
        %v1859 = vshrl.u32 %v1858, 7
        %v1860 = vsub.s32 %v1857, %v1859
        %v1861 = vrot.slane %v1854, %v1860
        %v1862 = vcombine.high %v1861, %v1861
        %v1864 = vunpack.c.l.s4 1966171168
        %v1865 = vunpack.c.0.s8 %v1864
        %v1866 = vlaneseq
        %v1867 = vshrl.u32 %v1866, 7
        %v1868 = vsub.s32 %v1865, %v1867
        %v1869 = vrot.slane %v1861, %v1868
        %v1871 = vunpack.c.l.s4 1966171168
        %v1872 = vunpack.c.0.s8 %v1871
        %v1873 = vlaneseq
        %v1874 = vshrl.u32 %v1873, 7
        %v1875 = vsub.s32 %v1872, %v1874
        %v1876 = vrot.slane %v1862, %v1875
        %v1877 = vcombine.high %v1869, %v1869
        %v1878 = vcombine.high %v1876, %v1876
        %1881 = vst [vmem:[#allocation2 + $0x4] sm:$0x1] %v1877
        %1882 = vst [vmem:[#allocation2 + $0xc] sm:$0x1] %v1878
        %1883 = vst [vmem:[#allocation5 + $0x4] sm:$0x1] %v1877
        %1884 = vst [vmem:[#allocation5 + $0xc] sm:$0x1] %v1878
        %v1885 = vpack.c.bf16 %v1852, %v1852
        %v1887 = vrot.slane %v1885, 3
        %1889 = vmatprep.subr.bf16.mxu0 %v1275
        %1890 = vmatpush1.bf16.msra.mxu0 %v1274
        %1891 = vmatprep.subr.bf16.mxu0 %v1271
        %1892 = vmatpush1.bf16.msra.mxu0 %v1270
        %1893 = vmatprep.subr.bf16.mxu0 %v1267
        %1894 = vmatpush1.bf16.msra.mxu0 %v1266
        %1895 = vmatprep.subr.bf16.mxu0 %v1263
        %1896 = vmatpush1.bf16.msra.mxu0 %v1262
        %1897 = vmatprep.subr.bf16.mxu0 %v1259
        %1898 = vmatpush1.bf16.msra.mxu0 %v1258
        %1899 = vmatprep.subr.bf16.mxu0 %v1255
        %1900 = vmatpush1.bf16.msra.mxu0 %v1254
        %1901 = vmatprep.subr.bf16.mxu0 %v1251
        %1902 = vmatpush1.bf16.msra.mxu0 %v1250
        %1903 = vmatprep.subr.bf16.mxu0 %v1247
        %1904 = vmatpush1.bf16.msra.mxu0 %v1246
        %1905 = vmatprep.subr.bf16.mxu0 0
        %1906 = vmatpush2.bf16.msra.mxu0 0
        %1907 = vmatprep.subr.bf16.mxu0 0
        %1908 = vmatpush2.bf16.msra.mxu0 0
        %1909 = vmatprep.subr.bf16.mxu0 0
        %1910 = vmatpush2.bf16.msra.mxu0 0
        %1911 = vmatprep.subr.bf16.mxu0 0
        %1912 = vmatpush2.bf16.msra.mxu0 0
        %1913 = vmatprep.subr.bf16.mxu0 0
        %1914 = vmatpush2.bf16.msra.mxu0 0
        %1915 = vmatprep.subr.bf16.mxu0 0
        %1916 = vmatpush2.bf16.msra.mxu0 0
        %1917 = vmatprep.subr.bf16.mxu0 0
        %1918 = vmatpush2.bf16.msra.mxu0 0
        %1919 = vmatprep.subr.bf16.mxu0 0
        %1920 = vmatpush2.bf16.msra.mxu0 0
        %1921 = vmatprep.mubr.bf16.mxu0 0
        %1922 = vmatmul.mubr.bf16.gmra.mxu0 %v1887
        %v1923 = vpop.f32.mrf.mxu0
        %v1924 = vadd.f32 0.0, %v1923
        %v1925 = vpop.f32.mrf.mxu0
        %v1926 = vadd.f32 0.0, %v1925
        %v1927 = vpop.f32.mrf.mxu0
        %v1928 = vpop.f32.mrf.mxu0
        %1929 = vdwg.mxu0
        %1930 = vmatprep.subr.bf16.mxu0 %v1277
        %1931 = vmatpush1.bf16.msra.mxu0 %v1276
        %1932 = vmatprep.subr.bf16.mxu0 %v1273
        %1933 = vmatpush1.bf16.msra.mxu0 %v1272
        %1934 = vmatprep.subr.bf16.mxu0 %v1269
        %1935 = vmatpush1.bf16.msra.mxu0 %v1268
        %1936 = vmatprep.subr.bf16.mxu0 %v1265
        %1937 = vmatpush1.bf16.msra.mxu0 %v1264
        %1938 = vmatprep.subr.bf16.mxu0 %v1261
        %1939 = vmatpush1.bf16.msra.mxu0 %v1260
        %1940 = vmatprep.subr.bf16.mxu0 %v1257
        %1941 = vmatpush1.bf16.msra.mxu0 %v1256
        %1942 = vmatprep.subr.bf16.mxu0 %v1253
        %1943 = vmatpush1.bf16.msra.mxu0 %v1252
        %1944 = vmatprep.subr.bf16.mxu0 %v1249
        %1945 = vmatpush1.bf16.msra.mxu0 %v1248
        %1946 = vmatprep.subr.bf16.mxu0 0
        %1947 = vmatpush2.bf16.msra.mxu0 0
        %1948 = vmatprep.subr.bf16.mxu0 0
        %1949 = vmatpush2.bf16.msra.mxu0 0
        %1950 = vmatprep.subr.bf16.mxu0 0
        %1951 = vmatpush2.bf16.msra.mxu0 0
        %1952 = vmatprep.subr.bf16.mxu0 0
        %1953 = vmatpush2.bf16.msra.mxu0 0
        %1954 = vmatprep.subr.bf16.mxu0 0
        %1955 = vmatpush2.bf16.msra.mxu0 0
        %1956 = vmatprep.subr.bf16.mxu0 0
        %1957 = vmatpush2.bf16.msra.mxu0 0
        %1958 = vmatprep.subr.bf16.mxu0 0
        %1959 = vmatpush2.bf16.msra.mxu0 0
        %1960 = vmatprep.subr.bf16.mxu0 0
        %1961 = vmatpush2.bf16.msra.mxu0 0
        %1962 = vmatprep.mubr.bf16.mxu0 0
        %1963 = vmatmul.mubr.bf16.gmra.mxu0 %v1887
        %v1964 = vpop.f32.mrf.mxu0
        %v1965 = vadd.f32 0.0, %v1964
        %v1966 = vpop.f32.mrf.mxu0
        %v1967 = vadd.f32 0.0, %v1966
        %v1968 = vpop.f32.mrf.mxu0
        %v1969 = vpop.f32.mrf.mxu0
        %1970 = vdwg.mxu0
        %1971 = vst [vmem:[#allocation4] sm:$0x3] %v1924
        %1972 = vst [vmem:[#allocation4 + $0x2] sm:$0x3] %v1926
        %1973 = vst [vmem:[#allocation4 + $0x4] sm:$0x3] %v1965
        %1974 = vst [vmem:[#allocation4 + $0x6] sm:$0x3] %v1967
        %s1975 = scalar_lea.vmem [#allocation3], 40
        %v1976 = vld [vmem:[%s1975] sm:$0xff]
        %v1977 = vld [vmem:[#allocation4] sm:$0xff]
        %v1978 = vadd.f32 %v1976, %v1977
        %v1979 = vmul.f32 %v1098, %v1978
        %v1980 = vtanh.pop %v1979
        %v1981 = vmul.f32 %v1098, %v1980
        %v1982 = vadd.f32 %v1981, %v1099
        %v1983 = vmul.f32 %v1982, %v1847
        %v1985 = vrot.slane %v1982, 4
        %v1987 = vmul.f32 %v1982, %v1985
        %v1989 = vrot.slane %v1987, 6
        %v1991 = vadd.f32 %v1983, %v1989
        %v1992 = vtanh.pop %v1991
        %v1994 = vrot.slane %v1992, 4
        %v1996 = vmul.f32 %v1982, %v1994
        %v1998 = vcombine.high %v1996, %v1996
        %v2000 = vunpack.c.l.s4 1966171168
        %v2001 = vunpack.c.0.s8 %v2000
        %v2002 = vlaneseq
        %v2003 = vshrl.u32 %v2002, 7
        %v2004 = vsub.s32 %v2001, %v2003
        %v2005 = vrot.slane %v1998, %v2004
        %v2006 = vcombine.high %v2005, %v2005
        %v2008 = vunpack.c.l.s4 1966171168
        %v2009 = vunpack.c.0.s8 %v2008
        %v2010 = vlaneseq
        %v2011 = vshrl.u32 %v2010, 7
        %v2012 = vsub.s32 %v2009, %v2011
        %v2013 = vrot.slane %v2005, %v2012
        %v2015 = vunpack.c.l.s4 1966171168
        %v2016 = vunpack.c.0.s8 %v2015
        %v2017 = vlaneseq
        %v2018 = vshrl.u32 %v2017, 7
        %v2019 = vsub.s32 %v2016, %v2018
        %v2020 = vrot.slane %v2006, %v2019
        %v2021 = vcombine.high %v2013, %v2013
        %v2022 = vcombine.high %v2020, %v2020
        %2025 = vst [vmem:[#allocation2 + $0x5] sm:$0x1] %v2021
        %2026 = vst [vmem:[#allocation2 + $0xd] sm:$0x1] %v2022
        %2027 = vst [vmem:[#allocation5 + $0x5] sm:$0x1] %v2021
        %2028 = vst [vmem:[#allocation5 + $0xd] sm:$0x1] %v2022
        %v2029 = vpack.c.bf16 %v1996, %v1996
        %v2031 = vrot.slane %v2029, 3
        %2033 = vmatprep.subr.bf16.mxu0 %v1275
        %2034 = vmatpush1.bf16.msra.mxu0 %v1274
        %2035 = vmatprep.subr.bf16.mxu0 %v1271
        %2036 = vmatpush1.bf16.msra.mxu0 %v1270
        %2037 = vmatprep.subr.bf16.mxu0 %v1267
        %2038 = vmatpush1.bf16.msra.mxu0 %v1266
        %2039 = vmatprep.subr.bf16.mxu0 %v1263
        %2040 = vmatpush1.bf16.msra.mxu0 %v1262
        %2041 = vmatprep.subr.bf16.mxu0 %v1259
        %2042 = vmatpush1.bf16.msra.mxu0 %v1258
        %2043 = vmatprep.subr.bf16.mxu0 %v1255
        %2044 = vmatpush1.bf16.msra.mxu0 %v1254
        %2045 = vmatprep.subr.bf16.mxu0 %v1251
        %2046 = vmatpush1.bf16.msra.mxu0 %v1250
        %2047 = vmatprep.subr.bf16.mxu0 %v1247
        %2048 = vmatpush1.bf16.msra.mxu0 %v1246
        %2049 = vmatprep.subr.bf16.mxu0 0
        %2050 = vmatpush2.bf16.msra.mxu0 0
        %2051 = vmatprep.subr.bf16.mxu0 0
        %2052 = vmatpush2.bf16.msra.mxu0 0
        %2053 = vmatprep.subr.bf16.mxu0 0
        %2054 = vmatpush2.bf16.msra.mxu0 0
        %2055 = vmatprep.subr.bf16.mxu0 0
        %2056 = vmatpush2.bf16.msra.mxu0 0
        %2057 = vmatprep.subr.bf16.mxu0 0
        %2058 = vmatpush2.bf16.msra.mxu0 0
        %2059 = vmatprep.subr.bf16.mxu0 0
        %2060 = vmatpush2.bf16.msra.mxu0 0
        %2061 = vmatprep.subr.bf16.mxu0 0
        %2062 = vmatpush2.bf16.msra.mxu0 0
        %2063 = vmatprep.subr.bf16.mxu0 0
        %2064 = vmatpush2.bf16.msra.mxu0 0
        %2065 = vmatprep.mubr.bf16.mxu0 0
        %2066 = vmatmul.mubr.bf16.gmra.mxu0 %v2031
        %v2067 = vpop.f32.mrf.mxu0
        %v2068 = vadd.f32 0.0, %v2067
        %v2069 = vpop.f32.mrf.mxu0
        %v2070 = vadd.f32 0.0, %v2069
        %v2071 = vpop.f32.mrf.mxu0
        %v2072 = vpop.f32.mrf.mxu0
        %2073 = vdwg.mxu0
        %2074 = vmatprep.subr.bf16.mxu0 %v1277
        %2075 = vmatpush1.bf16.msra.mxu0 %v1276
        %2076 = vmatprep.subr.bf16.mxu0 %v1273
        %2077 = vmatpush1.bf16.msra.mxu0 %v1272
        %2078 = vmatprep.subr.bf16.mxu0 %v1269
        %2079 = vmatpush1.bf16.msra.mxu0 %v1268
        %2080 = vmatprep.subr.bf16.mxu0 %v1265
        %2081 = vmatpush1.bf16.msra.mxu0 %v1264
        %2082 = vmatprep.subr.bf16.mxu0 %v1261
        %2083 = vmatpush1.bf16.msra.mxu0 %v1260
        %2084 = vmatprep.subr.bf16.mxu0 %v1257
        %2085 = vmatpush1.bf16.msra.mxu0 %v1256
        %2086 = vmatprep.subr.bf16.mxu0 %v1253
        %2087 = vmatpush1.bf16.msra.mxu0 %v1252
        %2088 = vmatprep.subr.bf16.mxu0 %v1249
        %2089 = vmatpush1.bf16.msra.mxu0 %v1248
        %2090 = vmatprep.subr.bf16.mxu0 0
        %2091 = vmatpush2.bf16.msra.mxu0 0
        %2092 = vmatprep.subr.bf16.mxu0 0
        %2093 = vmatpush2.bf16.msra.mxu0 0
        %2094 = vmatprep.subr.bf16.mxu0 0
        %2095 = vmatpush2.bf16.msra.mxu0 0
        %2096 = vmatprep.subr.bf16.mxu0 0
        %2097 = vmatpush2.bf16.msra.mxu0 0
        %2098 = vmatprep.subr.bf16.mxu0 0
        %2099 = vmatpush2.bf16.msra.mxu0 0
        %2100 = vmatprep.subr.bf16.mxu0 0
        %2101 = vmatpush2.bf16.msra.mxu0 0
        %2102 = vmatprep.subr.bf16.mxu0 0
        %2103 = vmatpush2.bf16.msra.mxu0 0
        %2104 = vmatprep.subr.bf16.mxu0 0
        %2105 = vmatpush2.bf16.msra.mxu0 0
        %2106 = vmatprep.mubr.bf16.mxu0 0
        %2107 = vmatmul.mubr.bf16.gmra.mxu0 %v2031
        %v2108 = vpop.f32.mrf.mxu0
        %v2109 = vadd.f32 0.0, %v2108
        %v2110 = vpop.f32.mrf.mxu0
        %v2111 = vadd.f32 0.0, %v2110
        %v2112 = vpop.f32.mrf.mxu0
        %v2113 = vpop.f32.mrf.mxu0
        %2114 = vdwg.mxu0
        %2115 = vst [vmem:[#allocation4] sm:$0x3] %v2068
        %2116 = vst [vmem:[#allocation4 + $0x2] sm:$0x3] %v2070
        %2117 = vst [vmem:[#allocation4 + $0x4] sm:$0x3] %v2109
        %2118 = vst [vmem:[#allocation4 + $0x6] sm:$0x3] %v2111
        %s2119 = scalar_lea.vmem [#allocation3], 48
        %v2120 = vld [vmem:[%s2119] sm:$0xff]
        %v2121 = vld [vmem:[#allocation4] sm:$0xff]
        %v2122 = vadd.f32 %v2120, %v2121
        %v2123 = vmul.f32 %v1098, %v2122
        %v2124 = vtanh.pop %v2123
        %v2125 = vmul.f32 %v1098, %v2124
        %v2126 = vadd.f32 %v2125, %v1099
        %v2127 = vmul.f32 %v2126, %v1991
        %v2129 = vrot.slane %v2126, 4
        %v2131 = vmul.f32 %v2126, %v2129
        %v2133 = vrot.slane %v2131, 6
        %v2135 = vadd.f32 %v2127, %v2133
        %v2136 = vtanh.pop %v2135
        %v2138 = vrot.slane %v2136, 4
        %v2140 = vmul.f32 %v2126, %v2138
        %v2142 = vcombine.high %v2140, %v2140
        %v2144 = vunpack.c.l.s4 1966171168
        %v2145 = vunpack.c.0.s8 %v2144
        %v2146 = vlaneseq
        %v2147 = vshrl.u32 %v2146, 7
        %v2148 = vsub.s32 %v2145, %v2147
        %v2149 = vrot.slane %v2142, %v2148
        %v2150 = vcombine.high %v2149, %v2149
        %v2152 = vunpack.c.l.s4 1966171168
        %v2153 = vunpack.c.0.s8 %v2152
        %v2154 = vlaneseq
        %v2155 = vshrl.u32 %v2154, 7
        %v2156 = vsub.s32 %v2153, %v2155
        %v2157 = vrot.slane %v2149, %v2156
        %v2159 = vunpack.c.l.s4 1966171168
        %v2160 = vunpack.c.0.s8 %v2159
        %v2161 = vlaneseq
        %v2162 = vshrl.u32 %v2161, 7
        %v2163 = vsub.s32 %v2160, %v2162
        %v2164 = vrot.slane %v2150, %v2163
        %v2165 = vcombine.high %v2157, %v2157
        %v2166 = vcombine.high %v2164, %v2164
        %2169 = vst [vmem:[#allocation2 + $0x6] sm:$0x1] %v2165
        %2170 = vst [vmem:[#allocation2 + $0xe] sm:$0x1] %v2166
        %2171 = vst [vmem:[#allocation5 + $0x6] sm:$0x1] %v2165
        %2172 = vst [vmem:[#allocation5 + $0xe] sm:$0x1] %v2166
        %v2173 = vpack.c.bf16 %v2140, %v2140
        %v2175 = vrot.slane %v2173, 3
        %2177 = vmatprep.subr.bf16.mxu0 %v1275
        %2178 = vmatpush1.bf16.msra.mxu0 %v1274
        %2179 = vmatprep.subr.bf16.mxu0 %v1271
        %2180 = vmatpush1.bf16.msra.mxu0 %v1270
        %2181 = vmatprep.subr.bf16.mxu0 %v1267
        %2182 = vmatpush1.bf16.msra.mxu0 %v1266
        %2183 = vmatprep.subr.bf16.mxu0 %v1263
        %2184 = vmatpush1.bf16.msra.mxu0 %v1262
        %2185 = vmatprep.subr.bf16.mxu0 %v1259
        %2186 = vmatpush1.bf16.msra.mxu0 %v1258
        %2187 = vmatprep.subr.bf16.mxu0 %v1255
        %2188 = vmatpush1.bf16.msra.mxu0 %v1254
        %2189 = vmatprep.subr.bf16.mxu0 %v1251
        %2190 = vmatpush1.bf16.msra.mxu0 %v1250
        %2191 = vmatprep.subr.bf16.mxu0 %v1247
        %2192 = vmatpush1.bf16.msra.mxu0 %v1246
        %2193 = vmatprep.subr.bf16.mxu0 0
        %2194 = vmatpush2.bf16.msra.mxu0 0
        %2195 = vmatprep.subr.bf16.mxu0 0
        %2196 = vmatpush2.bf16.msra.mxu0 0
        %2197 = vmatprep.subr.bf16.mxu0 0
        %2198 = vmatpush2.bf16.msra.mxu0 0
        %2199 = vmatprep.subr.bf16.mxu0 0
        %2200 = vmatpush2.bf16.msra.mxu0 0
        %2201 = vmatprep.subr.bf16.mxu0 0
        %2202 = vmatpush2.bf16.msra.mxu0 0
        %2203 = vmatprep.subr.bf16.mxu0 0
        %2204 = vmatpush2.bf16.msra.mxu0 0
        %2205 = vmatprep.subr.bf16.mxu0 0
        %2206 = vmatpush2.bf16.msra.mxu0 0
        %2207 = vmatprep.subr.bf16.mxu0 0
        %2208 = vmatpush2.bf16.msra.mxu0 0
        %2209 = vmatprep.mubr.bf16.mxu0 0
        %2210 = vmatmul.mubr.bf16.gmra.mxu0 %v2175
        %v2211 = vpop.f32.mrf.mxu0
        %v2212 = vadd.f32 0.0, %v2211
        %v2213 = vpop.f32.mrf.mxu0
        %v2214 = vadd.f32 0.0, %v2213
        %v2215 = vpop.f32.mrf.mxu0
        %v2216 = vpop.f32.mrf.mxu0
        %2217 = vdwg.mxu0
        %2218 = vmatprep.subr.bf16.mxu0 %v1277
        %2219 = vmatpush1.bf16.msra.mxu0 %v1276
        %2220 = vmatprep.subr.bf16.mxu0 %v1273
        %2221 = vmatpush1.bf16.msra.mxu0 %v1272
        %2222 = vmatprep.subr.bf16.mxu0 %v1269
        %2223 = vmatpush1.bf16.msra.mxu0 %v1268
        %2224 = vmatprep.subr.bf16.mxu0 %v1265
        %2225 = vmatpush1.bf16.msra.mxu0 %v1264
        %2226 = vmatprep.subr.bf16.mxu0 %v1261
        %2227 = vmatpush1.bf16.msra.mxu0 %v1260
        %2228 = vmatprep.subr.bf16.mxu0 %v1257
        %2229 = vmatpush1.bf16.msra.mxu0 %v1256
        %2230 = vmatprep.subr.bf16.mxu0 %v1253
        %2231 = vmatpush1.bf16.msra.mxu0 %v1252
        %2232 = vmatprep.subr.bf16.mxu0 %v1249
        %2233 = vmatpush1.bf16.msra.mxu0 %v1248
        %2234 = vmatprep.subr.bf16.mxu0 0
        %2235 = vmatpush2.bf16.msra.mxu0 0
        %2236 = vmatprep.subr.bf16.mxu0 0
        %2237 = vmatpush2.bf16.msra.mxu0 0
        %2238 = vmatprep.subr.bf16.mxu0 0
        %2239 = vmatpush2.bf16.msra.mxu0 0
        %2240 = vmatprep.subr.bf16.mxu0 0
        %2241 = vmatpush2.bf16.msra.mxu0 0
        %2242 = vmatprep.subr.bf16.mxu0 0
        %2243 = vmatpush2.bf16.msra.mxu0 0
        %2244 = vmatprep.subr.bf16.mxu0 0
        %2245 = vmatpush2.bf16.msra.mxu0 0
        %2246 = vmatprep.subr.bf16.mxu0 0
        %2247 = vmatpush2.bf16.msra.mxu0 0
        %2248 = vmatprep.subr.bf16.mxu0 0
        %2249 = vmatpush2.bf16.msra.mxu0 0
        %2250 = vmatprep.mubr.bf16.mxu0 0
        %2251 = vmatmul.mubr.bf16.gmra.mxu0 %v2175
        %v2252 = vpop.f32.mrf.mxu0
        %v2253 = vadd.f32 0.0, %v2252
        %v2254 = vpop.f32.mrf.mxu0
        %v2255 = vadd.f32 0.0, %v2254
        %v2256 = vpop.f32.mrf.mxu0
        %v2257 = vpop.f32.mrf.mxu0
        %2258 = vdwg.mxu0
        %2259 = vst [vmem:[#allocation4] sm:$0x3] %v2212
        %2260 = vst [vmem:[#allocation4 + $0x2] sm:$0x3] %v2214
        %2261 = vst [vmem:[#allocation4 + $0x4] sm:$0x3] %v2253
        %2262 = vst [vmem:[#allocation4 + $0x6] sm:$0x3] %v2255
        %s2263 = scalar_lea.vmem [#allocation3], 56
        %v2264 = vld [vmem:[%s2263] sm:$0xff]
        %v2265 = vld [vmem:[#allocation4] sm:$0xff]
        %v2266 = vadd.f32 %v2264, %v2265
        %v2267 = vmul.f32 %v1098, %v2266
        %v2268 = vtanh.pop %v2267
        %v2269 = vmul.f32 %v1098, %v2268
        %v2270 = vadd.f32 %v2269, %v1099
        %v2271 = vmul.f32 %v2270, %v2135
        %v2273 = vrot.slane %v2270, 4
        %v2275 = vmul.f32 %v2270, %v2273
        %v2277 = vrot.slane %v2275, 6
        %v2279 = vadd.f32 %v2271, %v2277
        %v2280 = vtanh.pop %v2279
        %v2282 = vrot.slane %v2280, 4
        %v2284 = vmul.f32 %v2270, %v2282
        %v2286 = vcombine.high %v2284, %v2284
        %v2288 = vunpack.c.l.s4 1966171168
        %v2289 = vunpack.c.0.s8 %v2288
        %v2290 = vlaneseq
        %v2291 = vshrl.u32 %v2290, 7
        %v2292 = vsub.s32 %v2289, %v2291
        %v2293 = vrot.slane %v2286, %v2292
        %v2294 = vcombine.high %v2293, %v2293
        %v2296 = vunpack.c.l.s4 1966171168
        %v2297 = vunpack.c.0.s8 %v2296
        %v2298 = vlaneseq
        %v2299 = vshrl.u32 %v2298, 7
        %v2300 = vsub.s32 %v2297, %v2299
        %v2301 = vrot.slane %v2293, %v2300
        %v2303 = vunpack.c.l.s4 1966171168
        %v2304 = vunpack.c.0.s8 %v2303
        %v2305 = vlaneseq
        %v2306 = vshrl.u32 %v2305, 7
        %v2307 = vsub.s32 %v2304, %v2306
        %v2308 = vrot.slane %v2294, %v2307
        %v2309 = vcombine.high %v2301, %v2301
        %v2310 = vcombine.high %v2308, %v2308
        %2313 = vst [vmem:[#allocation2 + $0x7] sm:$0x1] %v2309
        %2314 = vst [vmem:[#allocation2 + $0xf] sm:$0x1] %v2310
        %2315 = vst [vmem:[#allocation5 + $0x7] sm:$0x1] %v2309
        %2316 = vst [vmem:[#allocation5 + $0xf] sm:$0x1] %v2310
        // Predicated region
        $region41: #{textrnn_forward.1} parent=35 // pred_check
          %p2317 = pneg %p128
        $region42: #{textrnn_forward.1} parent=35 // pred_check_branch
          %2319 = sbr.rel (%p2317) target = $region44
        $region43: #{textrnn_forward.1} parent=35 // pred_region
          %s2321 = ssub.s32 256, 256
          %2322 = vsyncadd [#allocation6], %s2321
          %s2323 = sshll.u32 [#allocation5], 4
          %s2324 = int_to_ptr.vmem [resolvable:$true] %s2323
          %2329 = dma.vmem_to_hbm [thread:$0]  %s2324, 256, %s4, [#allocation6], 128, 128, 8
        $region44: #{textrnn_forward.1} parent=35 // pred_fallthru
          _
        // Predicated region
        $region45: #{textrnn_forward.1} parent=35 // pred_check
          %p2330 = pneg %p128
        $region46: #{textrnn_forward.1} parent=35 // pred_check_branch
          %2332 = sbr.rel (%p2330) target = $region48
        $region47: #{textrnn_forward.1} parent=35 // pred_region
          %2333 = dma.done [#allocation6], 256
        $region48: #{textrnn_forward.1} parent=35 // pred_fallthru
          _
      $region36: #{textrnn_forward.1} parent=5 // pred_fallthru
        _
      %p2334 = scmp.le.s32.totalorder 2, %s11
      // Predicated region
      $region49: #{textrnn_forward.1} parent=5 // pred_check
        %p2335 = pneg %p2334
      $region50: #{textrnn_forward.1} parent=5 // pred_check_branch
        %2337 = sbr.rel (%p2335) target = $region52
      $region51: #{textrnn_forward.1} parent=5 // pred_region
        %s2338 = ssub.s32 %s11, 2
      $region52: #{textrnn_forward.1} parent=5 // pred_fallthru
        _
    $region6: #{textrnn_forward.1} parent=1 // loop_footer
      %s15 = sadd.s32 1, %s11
    $region7: #{textrnn_forward.1} parent=1 // loop_footer_branch
      %10 = sbr.rel target = $region3
    $region8: #{textrnn_forward.1} parent=1 // loop_exit
      _
    %2339 = vsyncpa [#allocation6], 1
    %s2340 = scalar_lea.sflag [#allocation6], 1
    %2341 = vsyncpa %s2340, 1

</llo_original>
